<compile_context>
chip_gen: v7x
topology: tpu7x:2x2x1
jax: 0.10.0
libtpu: 0.0.40
codegen_flags: <defaults>
</compile_context>

<pallas_src>
import jax
import jax.numpy as jnp
from jax.experimental import pallas as pl
from jax.experimental.pallas import tpu as pltpu


# ---------------------------------------------------------------------------
# Kernel
# ---------------------------------------------------------------------------
def _make_gnn_kernel(num_layers, tb, n, d):
    """Builds the fused multi-layer GNN kernel for one (TB-batch) grid step."""
    L, TB, N, D = num_layers, tb, n, d

    def kernel(nodes_ref, edges_ref,
               wcat_ref, we_e_ref, be_ref, wn_a_ref, bn_ref,
               h_out_ref, e_out_ref):
        # nodes_ref : [TB*N,   D]   (flat over batch*node, lane-dense D)
        # edges_ref : [TB*N*N, D]   (flat over batch*src*dst, lane-dense D)
        h0 = nodes_ref[...].astype(jnp.float32)
        e0 = edges_ref[...].astype(jnp.float32)

        def layer(l, carry):
            h, e = carry                                   # f32 state
            wcat = wcat_ref[l]                             # [D, 3D]  bf16
            we_m = we_e_ref[l]                             # [D, D]   bf16
            wn_a = wn_a_ref[l]                             # [D, D]   bf16
            b_e = be_ref[l].astype(jnp.float32)            # [1, D]
            b_n = bn_ref[l].astype(jnp.float32)            # [1, D]

            # --- one wide MXU push for all three h-based projections -------
            hw = jnp.dot(h.astype(jnp.bfloat16), wcat,
                         preferred_element_type=jnp.float32)       # [TB*N, 3D]
            t_src_b = hw[:, :D] + b_e          # edge bias folded into row term
            t_dst = hw[:, D:2 * D]
            t_nh = hw[:, 2 * D:]

            # --- edge/message matmul on the flat edge state (MXU) ----------
            t_msg = jnp.dot(e.astype(jnp.bfloat16), we_m,
                            preferred_element_type=jnp.float32)    # [TB*N*N, D]

            # broadcast term built per batch element, reshaped to flat once
            brd = (t_src_b.reshape(TB, N, 1, D)
                   + t_dst.reshape(TB, 1, N, D)).reshape(TB * N * N, D)
            e_new = jax.nn.relu(brd + t_msg) + e                   # residual

            # --- aggregate incoming messages over j (XLU reduce) -----------
            agg = e_new.reshape(TB * N, N, D).sum(axis=1)          # [TB*N, D]

            # --- node update (MXU) + residual -------------------------------
            h_new = jax.nn.relu(
                t_nh
                + jnp.dot(agg.astype(jnp.bfloat16), wn_a,
                          preferred_element_type=jnp.float32)
                + b_n) + h
            return h_new, e_new

        h, e = jax.lax.fori_loop(0, L, layer, (h0, e0), unroll=min(L, 2))

        h_out_ref[...] = h.astype(h_out_ref.dtype)
        e_out_ref[...] = e.astype(e_out_ref.dtype)

    return kernel


# ---------------------------------------------------------------------------
# Wrapper
# ---------------------------------------------------------------------------
def _gnn_pallas(nodes, edges, params):
    """Runs the fused message-passing GNN over the whole batch."""
    B, N, D = nodes.shape
    assert edges.shape == (B, N, N, D), edges.shape
    L = params["we_src"].shape[0]
    itemsize = nodes.dtype.itemsize

    # Fused projection weights (bf16 MXU operands, f32 biases).
    wcat = jnp.concatenate(
        [params["we_src"], params["we_dst"], params["wn_h"]], axis=-1
    ).astype(jnp.bfloat16)                               # [L, D, 3D]
    we_e = params["we_e"].astype(jnp.bfloat16)           # [L, D, D]
    wn_a = params["wn_a"].astype(jnp.bfloat16)           # [L, D, D]
    be = params["be"].astype(jnp.float32)                # [L, 1, D]
    bn = params["bn"].astype(jnp.float32)                # [L, 1, D]
    weights = (wcat, we_e, be, wn_a, bn)
    weight_bytes = sum(int(w.size) * w.dtype.itemsize for w in weights)

    # ---- generation-aware VMEM budget (no hard 32 MiB clamp) --------------
    try:
        vmem_cap = int(pltpu.get_tpu_info().vmem_capacity_bytes)
    except Exception:
        vmem_cap = 64 << 20              # conservative (v7x: 64 MiB per TC)
    vmem_limit = (vmem_cap * 3) // 4     # ~48 MiB on v7x, ~96 MiB on v5e/v6e

    def _step_bytes(tb):
        io = 2 * 2 * (tb * N * D + tb * N * N * D) * itemsize   # dbl-buffered in+out
        interm = 20 * tb * N * N * D                            # live f32/bf16 copies
        return io + interm + weight_bytes + (2 << 20)           # + headroom

    tb = 1
    for cand in range(B, 0, -1):
        if B % cand == 0 and _step_bytes(cand) <= vmem_limit:
            tb = cand
            break

    # Flatten once in the wrapper (metadata-only reshapes at XLA level).
    nodes_flat = nodes.reshape(B * N, D)
    edges_flat = edges.reshape(B * N * N, D)

    kernel = _make_gnn_kernel(L, tb, N, D)

    def _resident_spec(arr):
        nd = arr.ndim
        # same block every grid step -> resident weights, single-buffered
        return pl.BlockSpec(arr.shape, lambda b, _nd=nd: (0,) * _nd,
                            pipeline_mode=pl.Buffered(1))

    in_specs = [
        pl.BlockSpec((tb * N, D), lambda b: (b, 0)),
        pl.BlockSpec((tb * N * N, D), lambda b: (b, 0)),
    ] + [_resident_spec(w) for w in weights]

    out_specs = (
        pl.BlockSpec((tb * N, D), lambda b: (b, 0)),
        pl.BlockSpec((tb * N * N, D), lambda b: (b, 0)),
    )
    out_shape = (
        jax.ShapeDtypeStruct((B * N, D), nodes.dtype),
        jax.ShapeDtypeStruct((B * N * N, D), edges.dtype),
    )

    flops = int(B * L * (2 * N * D * 3 * D            # h @ Wcat
                         + 2 * N * N * D * D          # edges @ We_e
                         + 2 * N * D * D              # agg @ Wn_a
                         + 5 * N * N * D + 4 * N * D))
    bytes_accessed = int(2 * (nodes.size + edges.size) * itemsize + weight_bytes)

    h_out, e_out = pl.pallas_call(
        kernel,
        out_shape=out_shape,
        grid_spec=pltpu.PrefetchScalarGridSpec(
            num_scalar_prefetch=0,
            grid=(B // tb,),
            in_specs=in_specs,
            out_specs=out_specs,
        ),
        compiler_params=pltpu.CompilerParams(
            dimension_semantics=("parallel",),      # batch axis across TCs on v7x
            vmem_limit_bytes=int(vmem_limit),
        ),
        cost_estimate=pl.CostEstimate(
            flops=flops, transcendentals=0, bytes_accessed=bytes_accessed),
    )(nodes_flat, edges_flat, *weights)

    return h_out.reshape(B, N, D), e_out.reshape(B, N, N, D)


def processor_forward(e, x, params, channels_cat_to_output):
    """Pallas equivalent of Processor.forward(e, x)."""
    nodes, edges = e[0], e[1]
    h_out, e_out = _gnn_pallas(nodes, edges, params)

    if channels_cat_to_output is None:
        # TODO(synk): the PyTorch forward dereferences an undefined variable when
        # channels_cat_to_output is None; only the non-None path is supported.
        raise ValueError("channels_cat_to_output must not be None")

    # torch.cat([x[0][..., channels], out[0]], dim=2) -- pure (lane-unaligned)
    # layout plumbing, kept outside the kernel to keep in-kernel stores lane-dense.
    static = x[0][..., list(channels_cat_to_output)]
    nodes_w_static = jnp.concatenate([static.astype(h_out.dtype), h_out], axis=-1)
    return (nodes_w_static, e_out)


# ---------------------------------------------------------------------------
# Pure-JAX reference (mirrors the kernel math, incl. bf16 MXU operands).
# ---------------------------------------------------------------------------
def processor_reference(e, x, params, channels_cat_to_output):
    nodes, edges = e[0], e[1]
    h = nodes.astype(jnp.float32)
    m = edges.astype(jnp.float32)
    L = params["we_src"].shape[0]

    def bdot(a, w):
        return jnp.einsum("...d,de->...e",
                          a.astype(jnp.bfloat16), w.astype(jnp.bfloat16),
                          preferred_element_type=jnp.float32)

    for l in range(L):
        t_src = bdot(h, params["we_src"][l]) + params["be"][l][None]
        t_dst = bdot(h, params["we_dst"][l])
        t_msg = bdot(m, params["we_e"][l])
        m_new = jax.nn.relu(t_src[:, :, None, :] + t_dst[:, None, :, :] + t_msg) + m
        agg = m_new.sum(axis=2)
        h = jax.nn.relu(bdot(h, params["wn_h"][l]) + bdot(agg, params["wn_a"][l])
                        + params["bn"][l][None]) + h
        m = m_new

    static = x[0][..., list(channels_cat_to_output)].astype(jnp.float32)
    nodes_w_static = jnp.concatenate([static, h], axis=-1)
    return (nodes_w_static.astype(nodes.dtype), m.astype(edges.dtype))


def init_params(key, num_layers, emb_dim):
    L, D = num_layers, emb_dim
    scale = 1.0 / (D ** 0.5)
    ks = jax.random.split(key, 7)
    return {
        "we_src": scale * jax.random.normal(ks[0], (L, D, D), jnp.float32),
        "we_dst": scale * jax.random.normal(ks[1], (L, D, D), jnp.float32),
        "we_e":   scale * jax.random.normal(ks[2], (L, D, D), jnp.float32),
        "be":     0.01 * jax.random.normal(ks[3], (L, 1, D), jnp.float32),
        "wn_h":   scale * jax.random.normal(ks[4], (L, D, D), jnp.float32),
        "wn_a":   scale * jax.random.normal(ks[5], (L, D, D), jnp.float32),
        "bn":     0.01 * jax.random.normal(ks[6], (L, 1, D), jnp.float32),
    }


if __name__ == "__main__":
    key = jax.random.PRNGKey(0)
    B, N, D = 2, 8, 128         # batch, agents/nodes, emb_dim (lane-dense)
    num_layers = 2
    C_in = 6                    # raw input channels on x[0]
    channels = (0, 1)           # channels_cat_to_output

    k0, k1, k2, k3 = jax.random.split(key, 4)
    enc_nodes = jax.random.normal(k0, (B, N, D), jnp.float32)            # e[0]
    enc_edges = 0.5 * jax.random.normal(k1, (B, N, N, D), jnp.float32)   # e[1]
    x_nodes = jax.random.normal(k2, (B, N, C_in), jnp.float32)           # x[0]
    params = init_params(k3, num_layers, D)

    e_in = (enc_nodes, enc_edges)
    x_in = (x_nodes,)

    out = processor_forward(e_in, x_in, params, channels)
    jax.block_until_ready(out)

    ref = processor_reference(e_in, x_in, params, channels)

    assert out[0].shape == (B, N, len(channels) + D), out[0].shape
    assert out[1].shape == (B, N, N, D), out[1].shape
    assert out[0].dtype == enc_nodes.dtype and out[1].dtype == enc_edges.dtype
    assert jnp.allclose(out[0], ref[0], atol=2e-2, rtol=2e-2)
    assert jnp.allclose(out[1], ref[1], atol=2e-2, rtol=2e-2)

    print("KERNEL_OK")
</pallas_src>

<mosaic_0001>
module attributes {stable_mosaic.version = 11 : i64} {
  func.func @kernel(%arg0: i32, %arg1: memref<16x128xf32, #tpu.memory_space<vmem>>, %arg2: memref<128x128xf32, #tpu.memory_space<vmem>>, %arg3: memref<2x128x384xbf16, #tpu.memory_space<vmem>>, %arg4: memref<2x128x128xbf16, #tpu.memory_space<vmem>>, %arg5: memref<2x1x128xf32, #tpu.memory_space<vmem>>, %arg6: memref<2x128x128xbf16, #tpu.memory_space<vmem>>, %arg7: memref<2x1x128xf32, #tpu.memory_space<vmem>>, %arg8: memref<16x128xf32, #tpu.memory_space<vmem>>, %arg9: memref<128x128xf32, #tpu.memory_space<vmem>>) attributes {dimension_semantics = [#tpu.dimension_semantics<parallel>], iteration_bounds = array<i64: 1>, scalar_prefetch = 0 : i64, scratch_operands = 0 : i64, tpu.core_type = #tpu.core_type<tc>, window_params = [{transform_indices = @transform_0, window_bounds = array<i64: 16, 128>}, {transform_indices = @transform_1, window_bounds = array<i64: 128, 128>}, {pipeline_mode = #tpu.pipeline_mode<synchronous>, transform_indices = @transform_2, window_bounds = array<i64: 2, 128, 384>}, {pipeline_mode = #tpu.pipeline_mode<synchronous>, transform_indices = @transform_3, window_bounds = array<i64: 2, 128, 128>}, {pipeline_mode = #tpu.pipeline_mode<synchronous>, transform_indices = @transform_4, window_bounds = array<i64: 2, 1, 128>}, {pipeline_mode = #tpu.pipeline_mode<synchronous>, transform_indices = @transform_5, window_bounds = array<i64: 2, 128, 128>}, {pipeline_mode = #tpu.pipeline_mode<synchronous>, transform_indices = @transform_6, window_bounds = array<i64: 2, 1, 128>}, {transform_indices = @transform_7, window_bounds = array<i64: 16, 128>}, {transform_indices = @transform_8, window_bounds = array<i64: 128, 128>}]} {
    %c0 = arith.constant 0 : index
    %c0_0 = arith.constant 0 : index
    %0 = vector.load %arg1[%c0, %c0_0] : memref<16x128xf32, #tpu.memory_space<vmem>>, vector<16x128xf32>
    %c0_1 = arith.constant 0 : index
    %c0_2 = arith.constant 0 : index
    %1 = vector.load %arg2[%c0_1, %c0_2] : memref<128x128xf32, #tpu.memory_space<vmem>>, vector<128x128xf32>
    %c0_i32 = arith.constant 0 : i32
    %2 = arith.index_cast %c0_i32 : i32 to index
    %c0_3 = arith.constant 0 : index
    %c0_4 = arith.constant 0 : index
    %3 = vector.load %arg3[%2, %c0_3, %c0_4] : memref<2x128x384xbf16, #tpu.memory_space<vmem>>, vector<1x128x384xbf16>
    %4 = vector.shape_cast %3 : vector<1x128x384xbf16> to vector<128x384xbf16>
    %5 = arith.index_cast %c0_i32 : i32 to index
    %c0_5 = arith.constant 0 : index
    %c0_6 = arith.constant 0 : index
    %6 = vector.load %arg4[%5, %c0_5, %c0_6] : memref<2x128x128xbf16, #tpu.memory_space<vmem>>, vector<1x128x128xbf16>
    %7 = vector.shape_cast %6 : vector<1x128x128xbf16> to vector<128x128xbf16>
    %8 = arith.index_cast %c0_i32 : i32 to index
    %c0_7 = arith.constant 0 : index
    %c0_8 = arith.constant 0 : index
    %9 = vector.load %arg6[%8, %c0_7, %c0_8] : memref<2x128x128xbf16, #tpu.memory_space<vmem>>, vector<1x128x128xbf16>
    %10 = vector.shape_cast %9 : vector<1x128x128xbf16> to vector<128x128xbf16>
    %11 = arith.index_cast %c0_i32 : i32 to index
    %c0_9 = arith.constant 0 : index
    %c0_10 = arith.constant 0 : index
    %12 = vector.load %arg5[%11, %c0_9, %c0_10] : memref<2x1x128xf32, #tpu.memory_space<vmem>>, vector<1x1x128xf32>
    %13 = vector.shape_cast %12 : vector<1x1x128xf32> to vector<1x128xf32>
    %14 = arith.index_cast %c0_i32 : i32 to index
    %c0_11 = arith.constant 0 : index
    %c0_12 = arith.constant 0 : index
    %15 = vector.load %arg7[%14, %c0_11, %c0_12] : memref<2x1x128xf32, #tpu.memory_space<vmem>>, vector<1x1x128xf32>
    %16 = vector.shape_cast %15 : vector<1x1x128xf32> to vector<1x128xf32>
    %17 = arith.truncf %0 : vector<16x128xf32> to vector<16x128xbf16>
    %cst = arith.constant dense<0.000000e+00> : vector<16x384xf32>
    %18 = tpu.matmul %17, %4, %cst {dimension_numbers = #tpu.dot_dimension_numbers<[1], [0], [0], [1], [0, 0, 1, 1], [], []>} : vector<16x128xbf16>, vector<128x384xbf16>, vector<16x384xf32> -> vector<16x384xf32>
    %19 = vector.extract_strided_slice %18 {offsets = [0, 0], sizes = [16, 128], strides = [1, 1]} : vector<16x384xf32> to vector<16x128xf32>
    %20 = vector.broadcast %13 : vector<1x128xf32> to vector<16x128xf32>
    %21 = arith.addf %19, %20 : vector<16x128xf32>
    %22 = vector.extract_strided_slice %18 {offsets = [0, 128], sizes = [16, 128], strides = [1, 1]} : vector<16x384xf32> to vector<16x128xf32>
    %23 = vector.extract_strided_slice %18 {offsets = [0, 256], sizes = [16, 128], strides = [1, 1]} : vector<16x384xf32> to vector<16x128xf32>
    %24 = arith.truncf %1 : vector<128x128xf32> to vector<128x128xbf16>
    %cst_13 = arith.constant dense<0.000000e+00> : vector<128x128xf32>
    %25 = tpu.matmul %24, %7, %cst_13 {dimension_numbers = #tpu.dot_dimension_numbers<[1], [0], [0], [1], [0, 0, 1, 1], [], []>} : vector<128x128xbf16>, vector<128x128xbf16>, vector<128x128xf32> -> vector<128x128xf32>
    %26 = vector.shape_cast %21 : vector<16x128xf32> to vector<2x8x1x128xf32>
    %27 = vector.shape_cast %22 : vector<16x128xf32> to vector<2x1x8x128xf32>
    %28 = vector.broadcast %26 : vector<2x8x1x128xf32> to vector<2x8x8x128xf32>
    %29 = vector.broadcast %27 : vector<2x1x8x128xf32> to vector<2x8x8x128xf32>
    %30 = arith.addf %28, %29 : vector<2x8x8x128xf32>
    %31 = vector.shape_cast %30 : vector<2x8x8x128xf32> to vector<128x128xf32>
    %32 = arith.addf %31, %25 : vector<128x128xf32>
    %cst_14 = arith.constant 0.000000e+00 : f32
    %33 = vector.broadcast %cst_14 : f32 to vector<128x128xf32>
    %34 = arith.maximumf %32, %33 : vector<128x128xf32>
    %35 = arith.addf %34, %1 : vector<128x128xf32>
    %36 = vector.shape_cast %35 : vector<128x128xf32> to vector<16x8x128xf32>
    %cst_15 = arith.constant dense<0.000000e+00> : vector<16x128xf32>
    %37 = vector.multi_reduction <add>, %36, %cst_15 [1] : vector<16x8x128xf32> to vector<16x128xf32>
    %38 = arith.truncf %37 : vector<16x128xf32> to vector<16x128xbf16>
    %cst_16 = arith.constant dense<0.000000e+00> : vector<16x128xf32>
    %39 = tpu.matmul %38, %10, %cst_16 {dimension_numbers = #tpu.dot_dimension_numbers<[1], [0], [0], [1], [0, 0, 1, 1], [], []>} : vector<16x128xbf16>, vector<128x128xbf16>, vector<16x128xf32> -> vector<16x128xf32>
    %40 = arith.addf %23, %39 : vector<16x128xf32>
    %41 = vector.broadcast %16 : vector<1x128xf32> to vector<16x128xf32>
    %42 = arith.addf %40, %41 : vector<16x128xf32>
    %cst_17 = arith.constant 0.000000e+00 : f32
    %43 = vector.broadcast %cst_17 : f32 to vector<16x128xf32>
    %44 = arith.maximumf %42, %43 : vector<16x128xf32>
    %45 = arith.addf %44, %0 : vector<16x128xf32>
    %c1_i32 = arith.constant 1 : i32
    %46 = arith.index_cast %c1_i32 : i32 to index
    %c0_18 = arith.constant 0 : index
    %c0_19 = arith.constant 0 : index
    %47 = vector.load %arg3[%46, %c0_18, %c0_19] : memref<2x128x384xbf16, #tpu.memory_space<vmem>>, vector<1x128x384xbf16>
    %48 = vector.shape_cast %47 : vector<1x128x384xbf16> to vector<128x384xbf16>
    %49 = arith.index_cast %c1_i32 : i32 to index
    %c0_20 = arith.constant 0 : index
    %c0_21 = arith.constant 0 : index
    %50 = vector.load %arg4[%49, %c0_20, %c0_21] : memref<2x128x128xbf16, #tpu.memory_space<vmem>>, vector<1x128x128xbf16>
    %51 = vector.shape_cast %50 : vector<1x128x128xbf16> to vector<128x128xbf16>
    %52 = arith.index_cast %c1_i32 : i32 to index
    %c0_22 = arith.constant 0 : index
    %c0_23 = arith.constant 0 : index
    %53 = vector.load %arg6[%52, %c0_22, %c0_23] : memref<2x128x128xbf16, #tpu.memory_space<vmem>>, vector<1x128x128xbf16>
    %54 = vector.shape_cast %53 : vector<1x128x128xbf16> to vector<128x128xbf16>
    %55 = arith.index_cast %c1_i32 : i32 to index
    %c0_24 = arith.constant 0 : index
    %c0_25 = arith.constant 0 : index
    %56 = vector.load %arg5[%55, %c0_24, %c0_25] : memref<2x1x128xf32, #tpu.memory_space<vmem>>, vector<1x1x128xf32>
    %57 = vector.shape_cast %56 : vector<1x1x128xf32> to vector<1x128xf32>
    %58 = arith.index_cast %c1_i32 : i32 to index
    %c0_26 = arith.constant 0 : index
    %c0_27 = arith.constant 0 : index
    %59 = vector.load %arg7[%58, %c0_26, %c0_27] : memref<2x1x128xf32, #tpu.memory_space<vmem>>, vector<1x1x128xf32>
    %60 = vector.shape_cast %59 : vector<1x1x128xf32> to vector<1x128xf32>
    %61 = arith.truncf %45 : vector<16x128xf32> to vector<16x128xbf16>
    %cst_28 = arith.constant dense<0.000000e+00> : vector<16x384xf32>
    %62 = tpu.matmul %61, %48, %cst_28 {dimension_numbers = #tpu.dot_dimension_numbers<[1], [0], [0], [1], [0, 0, 1, 1], [], []>} : vector<16x128xbf16>, vector<128x384xbf16>, vector<16x384xf32> -> vector<16x384xf32>
    %63 = vector.extract_strided_slice %62 {offsets = [0, 0], sizes = [16, 128], strides = [1, 1]} : vector<16x384xf32> to vector<16x128xf32>
    %64 = vector.broadcast %57 : vector<1x128xf32> to vector<16x128xf32>
    %65 = arith.addf %63, %64 : vector<16x128xf32>
    %66 = vector.extract_strided_slice %62 {offsets = [0, 128], sizes = [16, 128], strides = [1, 1]} : vector<16x384xf32> to vector<16x128xf32>
    %67 = vector.extract_strided_slice %62 {offsets = [0, 256], sizes = [16, 128], strides = [1, 1]} : vector<16x384xf32> to vector<16x128xf32>
    %68 = arith.truncf %35 : vector<128x128xf32> to vector<128x128xbf16>
    %cst_29 = arith.constant dense<0.000000e+00> : vector<128x128xf32>
    %69 = tpu.matmul %68, %51, %cst_29 {dimension_numbers = #tpu.dot_dimension_numbers<[1], [0], [0], [1], [0, 0, 1, 1], [], []>} : vector<128x128xbf16>, vector<128x128xbf16>, vector<128x128xf32> -> vector<128x128xf32>
    %70 = vector.shape_cast %65 : vector<16x128xf32> to vector<2x8x1x128xf32>
    %71 = vector.shape_cast %66 : vector<16x128xf32> to vector<2x1x8x128xf32>
    %72 = vector.broadcast %70 : vector<2x8x1x128xf32> to vector<2x8x8x128xf32>
    %73 = vector.broadcast %71 : vector<2x1x8x128xf32> to vector<2x8x8x128xf32>
    %74 = arith.addf %72, %73 : vector<2x8x8x128xf32>
    %75 = vector.shape_cast %74 : vector<2x8x8x128xf32> to vector<128x128xf32>
    %76 = arith.addf %75, %69 : vector<128x128xf32>
    %cst_30 = arith.constant 0.000000e+00 : f32
    %77 = vector.broadcast %cst_30 : f32 to vector<128x128xf32>
    %78 = arith.maximumf %76, %77 : vector<128x128xf32>
    %79 = arith.addf %78, %35 : vector<128x128xf32>
    %80 = vector.shape_cast %79 : vector<128x128xf32> to vector<16x8x128xf32>
    %cst_31 = arith.constant dense<0.000000e+00> : vector<16x128xf32>
    %81 = vector.multi_reduction <add>, %80, %cst_31 [1] : vector<16x8x128xf32> to vector<16x128xf32>
    %82 = arith.truncf %81 : vector<16x128xf32> to vector<16x128xbf16>
    %cst_32 = arith.constant dense<0.000000e+00> : vector<16x128xf32>
    %83 = tpu.matmul %82, %54, %cst_32 {dimension_numbers = #tpu.dot_dimension_numbers<[1], [0], [0], [1], [0, 0, 1, 1], [], []>} : vector<16x128xbf16>, vector<128x128xbf16>, vector<16x128xf32> -> vector<16x128xf32>
    %84 = arith.addf %67, %83 : vector<16x128xf32>
    %85 = vector.broadcast %60 : vector<1x128xf32> to vector<16x128xf32>
    %86 = arith.addf %84, %85 : vector<16x128xf32>
    %cst_33 = arith.constant 0.000000e+00 : f32
    %87 = vector.broadcast %cst_33 : f32 to vector<16x128xf32>
    %88 = arith.maximumf %86, %87 : vector<16x128xf32>
    %89 = arith.addf %88, %45 : vector<16x128xf32>
    %c2_i32 = arith.constant 2 : i32
    %c0_34 = arith.constant 0 : index
    %c0_35 = arith.constant 0 : index
    %90 = vector.load %arg8[%c0_34, %c0_35] : memref<16x128xf32, #tpu.memory_space<vmem>>, vector<16x128xf32>
    tpu.vector_store %arg8[%c0_34, %c0_35], %89 {strides = array<i32>} : memref<16x128xf32, #tpu.memory_space<vmem>>, vector<16x128xf32>,
    %c0_36 = arith.constant 0 : index
    %c0_37 = arith.constant 0 : index
    %91 = vector.load %arg9[%c0_36, %c0_37] : memref<128x128xf32, #tpu.memory_space<vmem>>, vector<128x128xf32>
    tpu.vector_store %arg9[%c0_36, %c0_37], %79 {strides = array<i32>} : memref<128x128xf32, #tpu.memory_space<vmem>>, vector<128x128xf32>,
    return
  }
  func.func @transform_0(%arg0: i32) -> (i32, i32) {
    %c0_i32 = arith.constant 0 : i32
    %c0_i32_0 = arith.constant 0 : i32
    return %arg0, %c0_i32 : i32, i32
  }
  func.func @transform_1(%arg0: i32) -> (i32, i32) {
    %c0_i32 = arith.constant 0 : i32
    %c0_i32_0 = arith.constant 0 : i32
    return %arg0, %c0_i32 : i32, i32
  }
  func.func @transform_2(%arg0: i32) -> (i32, i32, i32) {
    %c0_i32 = arith.constant 0 : i32
    %c0_i32_0 = arith.constant 0 : i32
    %c0_i32_1 = arith.constant 0 : i32
    %c0_i32_2 = arith.constant 0 : i32
    return %c0_i32, %c0_i32_0, %c0_i32_1 : i32, i32, i32
  }
  func.func @transform_3(%arg0: i32) -> (i32, i32, i32) {
    %c0_i32 = arith.constant 0 : i32
    %c0_i32_0 = arith.constant 0 : i32
    %c0_i32_1 = arith.constant 0 : i32
    %c0_i32_2 = arith.constant 0 : i32
    return %c0_i32, %c0_i32_0, %c0_i32_1 : i32, i32, i32
  }
  func.func @transform_4(%arg0: i32) -> (i32, i32, i32) {
    %c0_i32 = arith.constant 0 : i32
    %c0_i32_0 = arith.constant 0 : i32
    %c0_i32_1 = arith.constant 0 : i32
    %c0_i32_2 = arith.constant 0 : i32
    return %c0_i32, %c0_i32_0, %c0_i32_1 : i32, i32, i32
  }
  func.func @transform_5(%arg0: i32) -> (i32, i32, i32) {
    %c0_i32 = arith.constant 0 : i32
    %c0_i32_0 = arith.constant 0 : i32
    %c0_i32_1 = arith.constant 0 : i32
    %c0_i32_2 = arith.constant 0 : i32
    return %c0_i32, %c0_i32_0, %c0_i32_1 : i32, i32, i32
  }
  func.func @transform_6(%arg0: i32) -> (i32, i32, i32) {
    %c0_i32 = arith.constant 0 : i32
    %c0_i32_0 = arith.constant 0 : i32
    %c0_i32_1 = arith.constant 0 : i32
    %c0_i32_2 = arith.constant 0 : i32
    return %c0_i32, %c0_i32_0, %c0_i32_1 : i32, i32, i32
  }
  func.func @transform_7(%arg0: i32) -> (i32, i32) {
    %c0_i32 = arith.constant 0 : i32
    %c0_i32_0 = arith.constant 0 : i32
    return %arg0, %c0_i32 : i32, i32
  }
  func.func @transform_8(%arg0: i32) -> (i32, i32) {
    %c0_i32 = arith.constant 0 : i32
    %c0_i32_0 = arith.constant 0 : i32
    return %arg0, %c0_i32 : i32, i32
  }
}

</mosaic_0001>

<llo_original>
// kernel: tpu_custom_call.1
$region0: #{tpu_custom_call.1}
  #allocation0 [shape = 'u32[]', space=smem, size = 0x4, offset = 0x4, fixed_abs, tag = 'smem constant byte address 0x4 - core index']
  #allocation1 [shape = 'u32[144,128]{1,0:T(1,128)}', space=vmem, size = 0x12000, scoped, tag = 'internal scratch']
  %s0 = inlined_call_operand.hbm [shape: f32[16,128], index: 0, kind: input, shape index: {}]
  %s1 = inlined_call_operand.hbm [shape: f32[128,128], index: 1, kind: input, shape index: {}]
  %s2 = inlined_call_operand.hbm [shape: bf16[2,128,384], index: 2, kind: input, shape index: {}]
  %s3 = inlined_call_operand.hbm [shape: bf16[2,128,128], index: 3, kind: input, shape index: {}]
  %s4 = inlined_call_operand.vmem [shape: f32[2,1,128], index: 4, kind: input, shape index: {}]
  %s5 = inlined_call_operand.hbm [shape: bf16[2,128,128], index: 5, kind: input, shape index: {}]
  %s6 = inlined_call_operand.vmem [shape: f32[2,1,128], index: 6, kind: input, shape index: {}]
  %s7 = inlined_call_operand.hbm [shape: f32[16,128], index: 7, kind: output, shape index: {0}]
  %s8 = inlined_call_operand.hbm [shape: f32[128,128], index: 8, kind: output, shape index: {1}]
  %9 = xla_tuple %s7, %s8
  %s10 = sld [smem:[#allocation0]]
  $region66: #{tpu_custom_call.1} parent=0
    _
  %s12 = ssub.s32 1, %s10
  %s13 = scalar_select 0, %s12, %s10
  $region1: #{tpu_custom_call.1} parent=0
    #allocation2 [shape = 'u8[8192]{0}', space=vmem, size = 0x2000, scoped, tag = 'input window, operand 0, single buffered']
    #allocation3 [shape = 's32[1]{0}', space=sflag, size = 0x4, scoped, tag = 'scoped memory for tpu_custom_call.1']
    #allocation4 [shape = 's32[1]{0}', space=sflag, size = 0x4, scoped, tag = 'scoped memory for tpu_custom_call.1']
    #allocation5 [shape = 'u8[65536]{0}', space=vmem, size = 0x10000, scoped, tag = 'input window, operand 1, single buffered']
    #allocation6 [shape = 's32[1]{0}', space=sflag, size = 0x4, scoped, tag = 'scoped memory for tpu_custom_call.1']
    #allocation7 [shape = 'u8[196608]{0}', space=vmem, size = 0x30000, scoped, tag = 'input window, operand 2, single buffered']
    #allocation8 [shape = 'u8[65536]{0}', space=vmem, size = 0x10000, scoped, tag = 'input window, operand 3, single buffered']
    #allocation9 [shape = 's32[1]{0}', space=sflag, size = 0x4, scoped, tag = 'scoped memory for tpu_custom_call.1']
    #allocation10 [shape = 'u8[65536]{0}', space=vmem, size = 0x10000, scoped, tag = 'input window, operand 5, single buffered']
    #allocation11 [shape = 'u8[8192]{0}', space=vmem, size = 0x2000, scoped, tag = 'output window, operand 0, single buffered']
    #allocation12 [shape = 'u8[65536]{0}', space=vmem, size = 0x10000, scoped, tag = 'output window, operand 1, single buffered']
    #allocation13 [shape = 's32[1]{0}', space=sflag, size = 0x4, scoped, tag = 'scoped memory for tpu_custom_call.1']
    %14 = vsyncpa [#allocation3], 0
    %15 = vsyncpa [#allocation6], 0
    %16 = vsyncpa [#allocation9], 0
    %17 = vsyncpa [#allocation4], 0
    %18 = vsyncpa [#allocation13], 0
    // Predicated region
    $region2: #{tpu_custom_call.1} parent=1 // pred_check
      _
    $region3: #{tpu_custom_call.1} parent=1 // pred_check_branch
      %20 = sbr.rel (0) target = $region5
    $region4: #{tpu_custom_call.1} parent=1 // pred_region
      %s22 = ssub.s32 256, 256
      %23 = vsyncadd [#allocation3], %s22
      %s24 = sshll.u32 [#allocation2], 4
      %s25 = int_to_ptr.vmem [resolvable:$true] %s24
      %30 = dma.hbm_to_vmem [thread:$0]  %s0, 256, %s25, [#allocation3], 128, 128, 8
    $region5: #{tpu_custom_call.1} parent=1 // pred_fallthru
      _
    // Predicated region
    $region6: #{tpu_custom_call.1} parent=1 // pred_check
      _
    $region7: #{tpu_custom_call.1} parent=1 // pred_check_branch
      %32 = sbr.rel (0) target = $region9
    $region8: #{tpu_custom_call.1} parent=1 // pred_region
      %s34 = ssub.s32 2048, 2048
      %35 = vsyncadd [#allocation6], %s34
      %s36 = sshll.u32 [#allocation5], 4
      %s37 = int_to_ptr.vmem [resolvable:$true] %s36
      %42 = dma.hbm_to_vmem [thread:$0]  %s1, 2048, %s37, [#allocation6], 128, 128, 8
    $region9: #{tpu_custom_call.1} parent=1 // pred_fallthru
      _
    // Predicated region
    $region10: #{tpu_custom_call.1} parent=1 // pred_check
      _
    $region11: #{tpu_custom_call.1} parent=1 // pred_check_branch
      %44 = sbr.rel (0) target = $region13
    $region12: #{tpu_custom_call.1} parent=1 // pred_region
      %s46 = ssub.s32 6144, 6144
      %47 = vsyncadd [#allocation6], %s46
      %s48 = sshll.u32 [#allocation7], 4
      %s49 = int_to_ptr.vmem [resolvable:$true] %s48
      %54 = dma.hbm_to_vmem [thread:$0]  %s2, 6144, %s49, [#allocation6], 192, 192, 12
    $region13: #{tpu_custom_call.1} parent=1 // pred_fallthru
      _
    // Predicated region
    $region14: #{tpu_custom_call.1} parent=1 // pred_check
      _
    $region15: #{tpu_custom_call.1} parent=1 // pred_check_branch
      %56 = sbr.rel (0) target = $region17
    $region16: #{tpu_custom_call.1} parent=1 // pred_region
      %s58 = ssub.s32 2048, 2048
      %59 = vsyncadd [#allocation9], %s58
      %s60 = sshll.u32 [#allocation8], 4
      %s61 = int_to_ptr.vmem [resolvable:$true] %s60
      %66 = dma.hbm_to_vmem [thread:$0]  %s3, 2048, %s61, [#allocation9], 64, 64, 4
    $region17: #{tpu_custom_call.1} parent=1 // pred_fallthru
      _
    // Predicated region
    $region18: #{tpu_custom_call.1} parent=1 // pred_check
      _
    $region19: #{tpu_custom_call.1} parent=1 // pred_check_branch
      %68 = sbr.rel (0) target = $region21
    $region20: #{tpu_custom_call.1} parent=1 // pred_region
      _
    $region21: #{tpu_custom_call.1} parent=1 // pred_fallthru
      _
    // Predicated region
    $region22: #{tpu_custom_call.1} parent=1 // pred_check
      _
    $region23: #{tpu_custom_call.1} parent=1 // pred_check_branch
      %70 = sbr.rel (0) target = $region25
    $region24: #{tpu_custom_call.1} parent=1 // pred_region
      %s72 = ssub.s32 2048, 2048
      %73 = vsyncadd [#allocation9], %s72
      %s74 = sshll.u32 [#allocation10], 4
      %s75 = int_to_ptr.vmem [resolvable:$true] %s74
      %80 = dma.hbm_to_vmem [thread:$0]  %s5, 2048, %s75, [#allocation9], 64, 64, 4
    $region25: #{tpu_custom_call.1} parent=1 // pred_fallthru
      _
    // Predicated region
    $region26: #{tpu_custom_call.1} parent=1 // pred_check
      _
    $region27: #{tpu_custom_call.1} parent=1 // pred_check_branch
      %82 = sbr.rel (0) target = $region29
    $region28: #{tpu_custom_call.1} parent=1 // pred_region
      _
    $region29: #{tpu_custom_call.1} parent=1 // pred_fallthru
      _
    // Predicated region
    $region30: #{tpu_custom_call.1} parent=1 // pred_check
      _
    $region31: #{tpu_custom_call.1} parent=1 // pred_check_branch
      %84 = sbr.rel (0) target = $region33
    $region32: #{tpu_custom_call.1} parent=1 // pred_region
      %85 = dma.done [#allocation3], 256
    $region33: #{tpu_custom_call.1} parent=1 // pred_fallthru
      _
    // Predicated region
    $region34: #{tpu_custom_call.1} parent=1 // pred_check
      _
    $region35: #{tpu_custom_call.1} parent=1 // pred_check_branch
      %87 = sbr.rel (0) target = $region37
    $region36: #{tpu_custom_call.1} parent=1 // pred_region
      %88 = dma.done [#allocation6], 2048
    $region37: #{tpu_custom_call.1} parent=1 // pred_fallthru
      _
    // Predicated region
    $region38: #{tpu_custom_call.1} parent=1 // pred_check
      _
    $region39: #{tpu_custom_call.1} parent=1 // pred_check_branch
      %90 = sbr.rel (0) target = $region41
    $region40: #{tpu_custom_call.1} parent=1 // pred_region
      %91 = dma.done [#allocation6], 6144
    $region41: #{tpu_custom_call.1} parent=1 // pred_fallthru
      _
    // Predicated region
    $region42: #{tpu_custom_call.1} parent=1 // pred_check
      _
    $region43: #{tpu_custom_call.1} parent=1 // pred_check_branch
      %93 = sbr.rel (0) target = $region45
    $region44: #{tpu_custom_call.1} parent=1 // pred_region
      %94 = dma.done [#allocation9], 2048
    $region45: #{tpu_custom_call.1} parent=1 // pred_fallthru
      _
    // Predicated region
    $region46: #{tpu_custom_call.1} parent=1 // pred_check
      _
    $region47: #{tpu_custom_call.1} parent=1 // pred_check_branch
      %96 = sbr.rel (0) target = $region49
    $region48: #{tpu_custom_call.1} parent=1 // pred_region
      %97 = dma.done [#allocation9], 2048
    $region49: #{tpu_custom_call.1} parent=1 // pred_fallthru
      _
    %v99 = vld [vmem:[#allocation2] sm:$0xff]
    %v100 = vld [vmem:[#allocation2 + $0x8] sm:$0xff]
    %v101 = vld [vmem:[#allocation5] sm:$0xff]
    %v102 = vld [vmem:[#allocation5 + $0x8] sm:$0xff]
    %v103 = vld [vmem:[#allocation5 + $0x10] sm:$0xff]
    %v104 = vld [vmem:[#allocation5 + $0x18] sm:$0xff]
    %v105 = vld [vmem:[#allocation5 + $0x20] sm:$0xff]
    %v106 = vld [vmem:[#allocation5 + $0x28] sm:$0xff]
    %v107 = vld [vmem:[#allocation5 + $0x30] sm:$0xff]
    %v108 = vld [vmem:[#allocation5 + $0x38] sm:$0xff]
    %v109 = vld [vmem:[#allocation5 + $0x40] sm:$0xff]
    %v110 = vld [vmem:[#allocation5 + $0x48] sm:$0xff]
    %v111 = vld [vmem:[#allocation5 + $0x50] sm:$0xff]
    %v112 = vld [vmem:[#allocation5 + $0x58] sm:$0xff]
    %v113 = vld [vmem:[#allocation5 + $0x60] sm:$0xff]
    %v114 = vld [vmem:[#allocation5 + $0x68] sm:$0xff]
    %v115 = vld [vmem:[#allocation5 + $0x70] sm:$0xff]
    %v116 = vld [vmem:[#allocation5 + $0x78] sm:$0xff]
    %v117 = vld [vmem:[#allocation7] sm:$0xff]
    %v118 = vld [vmem:[#allocation7 + $0x8] sm:$0xf]
    %v119 = vld [vmem:[#allocation7 + $0xc] sm:$0xff]
    %v120 = vld [vmem:[#allocation7 + $0x14] sm:$0xf]
    %v121 = vld [vmem:[#allocation7 + $0x18] sm:$0xff]
    %v122 = vld [vmem:[#allocation7 + $0x20] sm:$0xf]
    %v123 = vld [vmem:[#allocation7 + $0x24] sm:$0xff]
    %v124 = vld [vmem:[#allocation7 + $0x2c] sm:$0xf]
    %v125 = vld [vmem:[#allocation7 + $0x30] sm:$0xff]
    %v126 = vld [vmem:[#allocation7 + $0x38] sm:$0xf]
    %v127 = vld [vmem:[#allocation7 + $0x3c] sm:$0xff]
    %v128 = vld [vmem:[#allocation7 + $0x44] sm:$0xf]
    %v129 = vld [vmem:[#allocation7 + $0x48] sm:$0xff]
    %v130 = vld [vmem:[#allocation7 + $0x50] sm:$0xf]
    %v131 = vld [vmem:[#allocation7 + $0x54] sm:$0xff]
    %v132 = vld [vmem:[#allocation7 + $0x5c] sm:$0xf]
    %v133 = vld [vmem:[#allocation7 + $0x60] sm:$0xff]
    %v134 = vld [vmem:[#allocation7 + $0x68] sm:$0xf]
    %v135 = vld [vmem:[#allocation7 + $0x6c] sm:$0xff]
    %v136 = vld [vmem:[#allocation7 + $0x74] sm:$0xf]
    %v137 = vld [vmem:[#allocation7 + $0x78] sm:$0xff]
    %v138 = vld [vmem:[#allocation7 + $0x80] sm:$0xf]
    %v139 = vld [vmem:[#allocation7 + $0x84] sm:$0xff]
    %v140 = vld [vmem:[#allocation7 + $0x8c] sm:$0xf]
    %v141 = vld [vmem:[#allocation7 + $0x90] sm:$0xff]
    %v142 = vld [vmem:[#allocation7 + $0x98] sm:$0xf]
    %v143 = vld [vmem:[#allocation7 + $0x9c] sm:$0xff]
    %v144 = vld [vmem:[#allocation7 + $0xa4] sm:$0xf]
    %v145 = vld [vmem:[#allocation7 + $0xa8] sm:$0xff]
    %v146 = vld [vmem:[#allocation7 + $0xb0] sm:$0xf]
    %v147 = vld [vmem:[#allocation7 + $0xb4] sm:$0xff]
    %v148 = vld [vmem:[#allocation7 + $0xbc] sm:$0xf]
    %v149 = vld [vmem:[#allocation8] sm:$0xf]
    %v150 = vld [vmem:[#allocation8 + $0x4] sm:$0xf]
    %v151 = vld [vmem:[#allocation8 + $0x8] sm:$0xf]
    %v152 = vld [vmem:[#allocation8 + $0xc] sm:$0xf]
    %v153 = vld [vmem:[#allocation8 + $0x10] sm:$0xf]
    %v154 = vld [vmem:[#allocation8 + $0x14] sm:$0xf]
    %v155 = vld [vmem:[#allocation8 + $0x18] sm:$0xf]
    %v156 = vld [vmem:[#allocation8 + $0x1c] sm:$0xf]
    %v157 = vld [vmem:[#allocation8 + $0x20] sm:$0xf]
    %v158 = vld [vmem:[#allocation8 + $0x24] sm:$0xf]
    %v159 = vld [vmem:[#allocation8 + $0x28] sm:$0xf]
    %v160 = vld [vmem:[#allocation8 + $0x2c] sm:$0xf]
    %v161 = vld [vmem:[#allocation8 + $0x30] sm:$0xf]
    %v162 = vld [vmem:[#allocation8 + $0x34] sm:$0xf]
    %v163 = vld [vmem:[#allocation8 + $0x38] sm:$0xf]
    %v164 = vld [vmem:[#allocation8 + $0x3c] sm:$0xf]
    %v165 = vld [vmem:[#allocation10] sm:$0xf]
    %v166 = vld [vmem:[#allocation10 + $0x4] sm:$0xf]
    %v167 = vld [vmem:[#allocation10 + $0x8] sm:$0xf]
    %v168 = vld [vmem:[#allocation10 + $0xc] sm:$0xf]
    %v169 = vld [vmem:[#allocation10 + $0x10] sm:$0xf]
    %v170 = vld [vmem:[#allocation10 + $0x14] sm:$0xf]
    %v171 = vld [vmem:[#allocation10 + $0x18] sm:$0xf]
    %v172 = vld [vmem:[#allocation10 + $0x1c] sm:$0xf]
    %v173 = vld [vmem:[#allocation10 + $0x20] sm:$0xf]
    %v174 = vld [vmem:[#allocation10 + $0x24] sm:$0xf]
    %v175 = vld [vmem:[#allocation10 + $0x28] sm:$0xf]
    %v176 = vld [vmem:[#allocation10 + $0x2c] sm:$0xf]
    %v177 = vld [vmem:[#allocation10 + $0x30] sm:$0xf]
    %v178 = vld [vmem:[#allocation10 + $0x34] sm:$0xf]
    %v179 = vld [vmem:[#allocation10 + $0x38] sm:$0xf]
    %v180 = vld [vmem:[#allocation10 + $0x3c] sm:$0xf]
    %v181 = vld [vmem:[%s4] sm:$0x1]
    %v182 = vld [vmem:[%s6] sm:$0x1]
    %v183 = vpack.c.bf16 %v100, %v99
    %v216 = vunpack.c.l.b16 %v117
    %v217 = vunpack.c.h.b16 %v117
    %v218 = vunpack.c.l.b16 %v118
    %v219 = vunpack.c.l.b16 %v119
    %v220 = vunpack.c.h.b16 %v119
    %v221 = vunpack.c.l.b16 %v120
    %v222 = vunpack.c.l.b16 %v121
    %v223 = vunpack.c.h.b16 %v121
    %v224 = vunpack.c.l.b16 %v122
    %v225 = vunpack.c.l.b16 %v123
    %v226 = vunpack.c.h.b16 %v123
    %v227 = vunpack.c.l.b16 %v124
    %v228 = vunpack.c.l.b16 %v125
    %v229 = vunpack.c.h.b16 %v125
    %v230 = vunpack.c.l.b16 %v126
    %v231 = vunpack.c.l.b16 %v127
    %v232 = vunpack.c.h.b16 %v127
    %v233 = vunpack.c.l.b16 %v128
    %v234 = vunpack.c.l.b16 %v129
    %v235 = vunpack.c.h.b16 %v129
    %v236 = vunpack.c.l.b16 %v130
    %v237 = vunpack.c.l.b16 %v131
    %v238 = vunpack.c.h.b16 %v131
    %v239 = vunpack.c.l.b16 %v132
    %v240 = vunpack.c.l.b16 %v133
    %v241 = vunpack.c.h.b16 %v133
    %v242 = vunpack.c.l.b16 %v134
    %v243 = vunpack.c.l.b16 %v135
    %v244 = vunpack.c.h.b16 %v135
    %v245 = vunpack.c.l.b16 %v136
    %v246 = vunpack.c.l.b16 %v137
    %v247 = vunpack.c.h.b16 %v137
    %v248 = vunpack.c.l.b16 %v138
    %v249 = vunpack.c.l.b16 %v139
    %v250 = vunpack.c.h.b16 %v139
    %v251 = vunpack.c.l.b16 %v140
    %v252 = vunpack.c.l.b16 %v141
    %v253 = vunpack.c.h.b16 %v141
    %v254 = vunpack.c.l.b16 %v142
    %v255 = vunpack.c.l.b16 %v143
    %v256 = vunpack.c.h.b16 %v143
    %v257 = vunpack.c.l.b16 %v144
    %v258 = vunpack.c.l.b16 %v145
    %v259 = vunpack.c.h.b16 %v145
    %v260 = vunpack.c.l.b16 %v146
    %v261 = vunpack.c.l.b16 %v147
    %v262 = vunpack.c.h.b16 %v147
    %v263 = vunpack.c.l.b16 %v148
    %v264 = vpack.c.b16 %v219, %v216
    %v265 = vpack.c.b16 %v220, %v217
    %v266 = vpack.c.b16 %v221, %v218
    %v267 = vpack.c.b16 %v225, %v222
    %v268 = vpack.c.b16 %v226, %v223
    %v269 = vpack.c.b16 %v227, %v224
    %v270 = vpack.c.b16 %v231, %v228
    %v271 = vpack.c.b16 %v232, %v229
    %v272 = vpack.c.b16 %v233, %v230
    %v273 = vpack.c.b16 %v237, %v234
    %v274 = vpack.c.b16 %v238, %v235
    %v275 = vpack.c.b16 %v239, %v236
    %v276 = vpack.c.b16 %v243, %v240
    %v277 = vpack.c.b16 %v244, %v241
    %v278 = vpack.c.b16 %v245, %v242
    %v279 = vpack.c.b16 %v249, %v246
    %v280 = vpack.c.b16 %v250, %v247
    %v281 = vpack.c.b16 %v251, %v248
    %v282 = vpack.c.b16 %v255, %v252
    %v283 = vpack.c.b16 %v256, %v253
    %v284 = vpack.c.b16 %v257, %v254
    %v285 = vpack.c.b16 %v261, %v258
    %v286 = vpack.c.b16 %v262, %v259
    %v287 = vpack.c.b16 %v263, %v260
    %312 = vmatprep.subr.bf16.mxu0 %v265
    %313 = vmatpush1.bf16.msra.mxu0 %v264
    %314 = vmatprep.subr.bf16.mxu0 %v268
    %315 = vmatpush1.bf16.msra.mxu0 %v267
    %316 = vmatprep.subr.bf16.mxu0 %v271
    %317 = vmatpush1.bf16.msra.mxu0 %v270
    %318 = vmatprep.subr.bf16.mxu0 %v274
    %319 = vmatpush1.bf16.msra.mxu0 %v273
    %320 = vmatprep.subr.bf16.mxu0 %v277
    %321 = vmatpush1.bf16.msra.mxu0 %v276
    %322 = vmatprep.subr.bf16.mxu0 %v280
    %323 = vmatpush1.bf16.msra.mxu0 %v279
    %324 = vmatprep.subr.bf16.mxu0 %v283
    %325 = vmatpush1.bf16.msra.mxu0 %v282
    %326 = vmatprep.subr.bf16.mxu0 %v286
    %327 = vmatpush1.bf16.msra.mxu0 %v285
    %328 = vmatprep.subr.bf16.mxu0 0
    %329 = vmatpush1.bf16.msra.mxu0 0
    %330 = vmatprep.subr.bf16.mxu0 0
    %331 = vmatpush1.bf16.msra.mxu0 0
    %332 = vmatprep.subr.bf16.mxu0 0
    %333 = vmatpush1.bf16.msra.mxu0 0
    %334 = vmatprep.subr.bf16.mxu0 0
    %335 = vmatpush1.bf16.msra.mxu0 0
    %336 = vmatprep.subr.bf16.mxu0 0
    %337 = vmatpush1.bf16.msra.mxu0 0
    %338 = vmatprep.subr.bf16.mxu0 0
    %339 = vmatpush1.bf16.msra.mxu0 0
    %340 = vmatprep.subr.bf16.mxu0 0
    %341 = vmatpush1.bf16.msra.mxu0 0
    %342 = vmatprep.subr.bf16.mxu0 0
    %343 = vmatpush1.bf16.msra.mxu0 0
    %344 = vmatprep.mubr.bf16.mxu0 0
    %345 = vmatmul.mubr.bf16.gmra.mrb[0].mxu0 %v183
    %v346 = vpop.f32.mrb[0].mxu0
    %v347 = vadd.f32 0.0, %v346
    %v348 = vpop.f32.mrb[0].mxu0
    %v349 = vadd.f32 0.0, %v348
    %v350 = vpop.f32.mrb[0].mxu0
    %v351 = vadd.f32 0.0, %v350
    %v352 = vpop.f32.mrb[0].mxu0
    %v353 = vadd.f32 0.0, %v352
    %354 = vdwg.mxu0
    %355 = vmatprep.subr.bf16.mxu0 0
    %356 = vmatpush1.bf16.msra.mxu0 %v266
    %357 = vmatprep.subr.bf16.mxu0 0
    %358 = vmatpush1.bf16.msra.mxu0 %v269
    %359 = vmatprep.subr.bf16.mxu0 0
    %360 = vmatpush1.bf16.msra.mxu0 %v272
    %361 = vmatprep.subr.bf16.mxu0 0
    %362 = vmatpush1.bf16.msra.mxu0 %v275
    %363 = vmatprep.subr.bf16.mxu0 0
    %364 = vmatpush1.bf16.msra.mxu0 %v278
    %365 = vmatprep.subr.bf16.mxu0 0
    %366 = vmatpush1.bf16.msra.mxu0 %v281
    %367 = vmatprep.subr.bf16.mxu0 0
    %368 = vmatpush1.bf16.msra.mxu0 %v284
    %369 = vmatprep.subr.bf16.mxu0 0
    %370 = vmatpush1.bf16.msra.mxu0 %v287
    %371 = vmatprep.subr.bf16.mxu0 0
    %372 = vmatpush1.bf16.msra.mxu0 0
    %373 = vmatprep.subr.bf16.mxu0 0
    %374 = vmatpush1.bf16.msra.mxu0 0
    %375 = vmatprep.subr.bf16.mxu0 0
    %376 = vmatpush1.bf16.msra.mxu0 0
    %377 = vmatprep.subr.bf16.mxu0 0
    %378 = vmatpush1.bf16.msra.mxu0 0
    %379 = vmatprep.subr.bf16.mxu0 0
    %380 = vmatpush1.bf16.msra.mxu0 0
    %381 = vmatprep.subr.bf16.mxu0 0
    %382 = vmatpush1.bf16.msra.mxu0 0
    %383 = vmatprep.subr.bf16.mxu0 0
    %384 = vmatpush1.bf16.msra.mxu0 0
    %385 = vmatprep.subr.bf16.mxu0 0
    %386 = vmatpush1.bf16.msra.mxu0 0
    %387 = vmatprep.mubr.bf16.mxu0 0
    %388 = vmatmul.mubr.bf16.gmra.mrb[0].mxu0 %v183
    %v389 = vpop.f32.mrb[0].mxu0
    %v390 = vadd.f32 0.0, %v389
    %v391 = vpop.f32.mrb[0].mxu0
    %v392 = vpop.f32.mrb[0].mxu0
    %v393 = vadd.f32 0.0, %v392
    %v394 = vpop.f32.mrb[0].mxu0
    %395 = vdwg.mxu0
    %v397 = vlaneseq
    %v398 = vshrl.u32 %v397, 7
    %v399 = vsub.s32 0, %v398
    %v400 = vrot.slane %v181, %v399
    %v402 = vadd.f32 %v347, %v400
    %v403 = vadd.f32 %v351, %v400
    %v404 = vpack.c.bf16 %v102, %v101
    %v405 = vpack.c.bf16 %v104, %v103
    %v406 = vpack.c.bf16 %v106, %v105
    %v407 = vpack.c.bf16 %v108, %v107
    %v408 = vpack.c.bf16 %v110, %v109
    %v409 = vpack.c.bf16 %v112, %v111
    %v410 = vpack.c.bf16 %v114, %v113
    %v411 = vpack.c.bf16 %v116, %v115
    %v428 = vunpack.c.l.b16 %v149
    %v429 = vunpack.c.l.b16 %v150
    %v430 = vunpack.c.l.b16 %v151
    %v431 = vunpack.c.l.b16 %v152
    %v432 = vunpack.c.l.b16 %v153
    %v433 = vunpack.c.l.b16 %v154
    %v434 = vunpack.c.l.b16 %v155
    %v435 = vunpack.c.l.b16 %v156
    %v436 = vunpack.c.l.b16 %v157
    %v437 = vunpack.c.l.b16 %v158
    %v438 = vunpack.c.l.b16 %v159
    %v439 = vunpack.c.l.b16 %v160
    %v440 = vunpack.c.l.b16 %v161
    %v441 = vunpack.c.l.b16 %v162
    %v442 = vunpack.c.l.b16 %v163
    %v443 = vunpack.c.l.b16 %v164
    %v444 = vpack.c.b16 %v429, %v428
    %v445 = vpack.c.b16 %v431, %v430
    %v446 = vpack.c.b16 %v433, %v432
    %v447 = vpack.c.b16 %v435, %v434
    %v448 = vpack.c.b16 %v437, %v436
    %v449 = vpack.c.b16 %v439, %v438
    %v450 = vpack.c.b16 %v441, %v440
    %v451 = vpack.c.b16 %v443, %v442
    %460 = vmatprep.subr.bf16.mxu0 0
    %461 = vmatpush1.bf16.msra.mxu0 %v444
    %462 = vmatprep.subr.bf16.mxu0 0
    %463 = vmatpush1.bf16.msra.mxu0 %v445
    %464 = vmatprep.subr.bf16.mxu0 0
    %465 = vmatpush1.bf16.msra.mxu0 %v446
    %466 = vmatprep.subr.bf16.mxu0 0
    %467 = vmatpush1.bf16.msra.mxu0 %v447
    %468 = vmatprep.subr.bf16.mxu0 0
    %469 = vmatpush1.bf16.msra.mxu0 %v448
    %470 = vmatprep.subr.bf16.mxu0 0
    %471 = vmatpush1.bf16.msra.mxu0 %v449
    %472 = vmatprep.subr.bf16.mxu0 0
    %473 = vmatpush1.bf16.msra.mxu0 %v450
    %474 = vmatprep.subr.bf16.mxu0 0
    %475 = vmatpush1.bf16.msra.mxu0 %v451
    %476 = vmatprep.subr.bf16.mxu0 0
    %477 = vmatpush1.bf16.msra.mxu0 0
    %478 = vmatprep.subr.bf16.mxu0 0
    %479 = vmatpush1.bf16.msra.mxu0 0
    %480 = vmatprep.subr.bf16.mxu0 0
    %481 = vmatpush1.bf16.msra.mxu0 0
    %482 = vmatprep.subr.bf16.mxu0 0
    %483 = vmatpush1.bf16.msra.mxu0 0
    %484 = vmatprep.subr.bf16.mxu0 0
    %485 = vmatpush1.bf16.msra.mxu0 0
    %486 = vmatprep.subr.bf16.mxu0 0
    %487 = vmatpush1.bf16.msra.mxu0 0
    %488 = vmatprep.subr.bf16.mxu0 0
    %489 = vmatpush1.bf16.msra.mxu0 0
    %490 = vmatprep.subr.bf16.mxu0 0
    %491 = vmatpush1.bf16.msra.mxu0 0
    %492 = vmatprep.mubr.bf16.mxu0 0
    %493 = vmatmul.mubr.bf16.gmra.mrb[0].mxu0 %v404
    %v494 = vpop.f32.mrb[0].mxu0
    %v495 = vadd.f32 0.0, %v494
    %v496 = vpop.f32.mrb[0].mxu0
    %v497 = vpop.f32.mrb[0].mxu0
    %v498 = vadd.f32 0.0, %v497
    %v499 = vpop.f32.mrb[0].mxu0
    %500 = vmatprep.mubr.bf16.mxu0 0
    %501 = vmatmul.mubr.bf16.gmra.mrb[0].mxu0 %v405
    %v502 = vpop.f32.mrb[0].mxu0
    %v503 = vadd.f32 0.0, %v502
    %v504 = vpop.f32.mrb[0].mxu0
    %v505 = vpop.f32.mrb[0].mxu0
    %v506 = vadd.f32 0.0, %v505
    %v507 = vpop.f32.mrb[0].mxu0
    %508 = vmatprep.mubr.bf16.mxu0 0
    %509 = vmatmul.mubr.bf16.gmra.mrb[0].mxu0 %v406
    %v510 = vpop.f32.mrb[0].mxu0
    %v511 = vadd.f32 0.0, %v510
    %v512 = vpop.f32.mrb[0].mxu0
    %v513 = vpop.f32.mrb[0].mxu0
    %v514 = vadd.f32 0.0, %v513
    %v515 = vpop.f32.mrb[0].mxu0
    %516 = vmatprep.mubr.bf16.mxu0 0
    %517 = vmatmul.mubr.bf16.gmra.mrb[0].mxu0 %v407
    %v518 = vpop.f32.mrb[0].mxu0
    %v519 = vadd.f32 0.0, %v518
    %v520 = vpop.f32.mrb[0].mxu0
    %v521 = vpop.f32.mrb[0].mxu0
    %v522 = vadd.f32 0.0, %v521
    %v523 = vpop.f32.mrb[0].mxu0
    %524 = vmatprep.mubr.bf16.mxu0 0
    %525 = vmatmul.mubr.bf16.gmra.mrb[0].mxu0 %v408
    %v526 = vpop.f32.mrb[0].mxu0
    %v527 = vadd.f32 0.0, %v526
    %v528 = vpop.f32.mrb[0].mxu0
    %v529 = vpop.f32.mrb[0].mxu0
    %v530 = vadd.f32 0.0, %v529
    %v531 = vpop.f32.mrb[0].mxu0
    %532 = vmatprep.mubr.bf16.mxu0 0
    %533 = vmatmul.mubr.bf16.gmra.mrb[0].mxu0 %v409
    %v534 = vpop.f32.mrb[0].mxu0
    %v535 = vadd.f32 0.0, %v534
    %v536 = vpop.f32.mrb[0].mxu0
    %v537 = vpop.f32.mrb[0].mxu0
    %v538 = vadd.f32 0.0, %v537
    %v539 = vpop.f32.mrb[0].mxu0
    %540 = vmatprep.mubr.bf16.mxu0 0
    %541 = vmatmul.mubr.bf16.gmra.mrb[0].mxu0 %v410
    %v542 = vpop.f32.mrb[0].mxu0
    %v543 = vadd.f32 0.0, %v542
    %v544 = vpop.f32.mrb[0].mxu0
    %v545 = vpop.f32.mrb[0].mxu0
    %v546 = vadd.f32 0.0, %v545
    %v547 = vpop.f32.mrb[0].mxu0
    %548 = vmatprep.mubr.bf16.mxu0 0
    %549 = vmatmul.mubr.bf16.gmra.mrb[0].mxu0 %v411
    %v550 = vpop.f32.mrb[0].mxu0
    %v551 = vadd.f32 0.0, %v550
    %v552 = vpop.f32.mrb[0].mxu0
    %v553 = vpop.f32.mrb[0].mxu0
    %v554 = vadd.f32 0.0, %v553
    %v555 = vpop.f32.mrb[0].mxu0
    %556 = vdwg.mxu0
    %v559 = vcombine.high %v402, %v402
    %v561 = vunpack.c.l.s4 1966171168
    %v562 = vunpack.c.0.s8 %v561
    %v563 = vlaneseq
    %v564 = vshrl.u32 %v563, 7
    %v565 = vsub.s32 %v562, %v564
    %v566 = vrot.slane %v402, %v565
    %v568 = vunpack.c.l.s4 1966171168
    %v569 = vunpack.c.0.s8 %v568
    %v570 = vlaneseq
    %v571 = vshrl.u32 %v570, 7
    %v572 = vsub.s32 %v569, %v571
    %v573 = vrot.slane %v559, %v572
    %v574 = vcombine.high %v566, %v566
    %v575 = vcombine.high %v573, %v573
    %v577 = vunpack.c.l.s4 1966171168
    %v578 = vunpack.c.0.s8 %v577
    %v579 = vlaneseq
    %v580 = vshrl.u32 %v579, 7
    %v581 = vsub.s32 %v578, %v580
    %v582 = vrot.slane %v566, %v581
    %v584 = vunpack.c.l.s4 1966171168
    %v585 = vunpack.c.0.s8 %v584
    %v586 = vlaneseq
    %v587 = vshrl.u32 %v586, 7
    %v588 = vsub.s32 %v585, %v587
    %v589 = vrot.slane %v573, %v588
    %v591 = vunpack.c.l.s4 1966171168
    %v592 = vunpack.c.0.s8 %v591
    %v593 = vlaneseq
    %v594 = vshrl.u32 %v593, 7
    %v595 = vsub.s32 %v592, %v594
    %v596 = vrot.slane %v574, %v595
    %v598 = vunpack.c.l.s4 1966171168
    %v599 = vunpack.c.0.s8 %v598
    %v600 = vlaneseq
    %v601 = vshrl.u32 %v600, 7
    %v602 = vsub.s32 %v599, %v601
    %v603 = vrot.slane %v575, %v602
    %v604 = vcombine.high %v582, %v582
    %v605 = vcombine.high %v589, %v589
    %v606 = vcombine.high %v596, %v596
    %v607 = vcombine.high %v603, %v603
    %v608 = vcombine.high %v403, %v403
    %v610 = vunpack.c.l.s4 1966171168
    %v611 = vunpack.c.0.s8 %v610
    %v612 = vlaneseq
    %v613 = vshrl.u32 %v612, 7
    %v614 = vsub.s32 %v611, %v613
    %v615 = vrot.slane %v403, %v614
    %v617 = vunpack.c.l.s4 1966171168
    %v618 = vunpack.c.0.s8 %v617
    %v619 = vlaneseq
    %v620 = vshrl.u32 %v619, 7
    %v621 = vsub.s32 %v618, %v620
    %v622 = vrot.slane %v608, %v621
    %v623 = vcombine.high %v615, %v615
    %v624 = vcombine.high %v622, %v622
    %v626 = vunpack.c.l.s4 1966171168
    %v627 = vunpack.c.0.s8 %v626
    %v628 = vlaneseq
    %v629 = vshrl.u32 %v628, 7
    %v630 = vsub.s32 %v627, %v629
    %v631 = vrot.slane %v615, %v630
    %v633 = vunpack.c.l.s4 1966171168
    %v634 = vunpack.c.0.s8 %v633
    %v635 = vlaneseq
    %v636 = vshrl.u32 %v635, 7
    %v637 = vsub.s32 %v634, %v636
    %v638 = vrot.slane %v622, %v637
    %v640 = vunpack.c.l.s4 1966171168
    %v641 = vunpack.c.0.s8 %v640
    %v642 = vlaneseq
    %v643 = vshrl.u32 %v642, 7
    %v644 = vsub.s32 %v641, %v643
    %v645 = vrot.slane %v623, %v644
    %v647 = vunpack.c.l.s4 1966171168
    %v648 = vunpack.c.0.s8 %v647
    %v649 = vlaneseq
    %v650 = vshrl.u32 %v649, 7
    %v651 = vsub.s32 %v648, %v650
    %v652 = vrot.slane %v624, %v651
    %v653 = vcombine.high %v631, %v631
    %v654 = vcombine.high %v638, %v638
    %v655 = vcombine.high %v645, %v645
    %v656 = vcombine.high %v652, %v652
    %v657 = vlaneseq
    %v658 = vshrl.u32 %v657, 7
    %v659 = vsub.s32 0, %v658
    %v660 = vrot.slane %v582, %v659
    %v661 = vlaneseq
    %v662 = vshrl.u32 %v661, 7
    %v663 = vsub.s32 0, %v662
    %v664 = vrot.slane %v596, %v663
    %v665 = vlaneseq
    %v666 = vshrl.u32 %v665, 7
    %v667 = vsub.s32 0, %v666
    %v668 = vrot.slane %v604, %v667
    %v669 = vlaneseq
    %v670 = vshrl.u32 %v669, 7
    %v671 = vsub.s32 0, %v670
    %v672 = vrot.slane %v606, %v671
    %v673 = vlaneseq
    %v674 = vshrl.u32 %v673, 7
    %v675 = vsub.s32 0, %v674
    %v676 = vrot.slane %v589, %v675
    %v677 = vlaneseq
    %v678 = vshrl.u32 %v677, 7
    %v679 = vsub.s32 0, %v678
    %v680 = vrot.slane %v603, %v679
    %v681 = vlaneseq
    %v682 = vshrl.u32 %v681, 7
    %v683 = vsub.s32 0, %v682
    %v684 = vrot.slane %v605, %v683
    %v685 = vlaneseq
    %v686 = vshrl.u32 %v685, 7
    %v687 = vsub.s32 0, %v686
    %v688 = vrot.slane %v607, %v687
    %v689 = vlaneseq
    %v690 = vshrl.u32 %v689, 7
    %v691 = vsub.s32 0, %v690
    %v692 = vrot.slane %v631, %v691
    %v693 = vlaneseq
    %v694 = vshrl.u32 %v693, 7
    %v695 = vsub.s32 0, %v694
    %v696 = vrot.slane %v645, %v695
    %v697 = vlaneseq
    %v698 = vshrl.u32 %v697, 7
    %v699 = vsub.s32 0, %v698
    %v700 = vrot.slane %v653, %v699
    %v701 = vlaneseq
    %v702 = vshrl.u32 %v701, 7
    %v703 = vsub.s32 0, %v702
    %v704 = vrot.slane %v655, %v703
    %v705 = vlaneseq
    %v706 = vshrl.u32 %v705, 7
    %v707 = vsub.s32 0, %v706
    %v708 = vrot.slane %v638, %v707
    %v709 = vlaneseq
    %v710 = vshrl.u32 %v709, 7
    %v711 = vsub.s32 0, %v710
    %v712 = vrot.slane %v652, %v711
    %v713 = vlaneseq
    %v714 = vshrl.u32 %v713, 7
    %v715 = vsub.s32 0, %v714
    %v716 = vrot.slane %v654, %v715
    %v717 = vlaneseq
    %v718 = vshrl.u32 %v717, 7
    %v719 = vsub.s32 0, %v718
    %v720 = vrot.slane %v656, %v719
    %v737 = vadd.f32 %v660, %v349
    %v738 = vadd.f32 %v664, %v349
    %v739 = vadd.f32 %v668, %v349
    %v740 = vadd.f32 %v672, %v349
    %v741 = vadd.f32 %v676, %v349
    %v742 = vadd.f32 %v680, %v349
    %v743 = vadd.f32 %v684, %v349
    %v744 = vadd.f32 %v688, %v349
    %v745 = vadd.f32 %v692, %v353
    %v746 = vadd.f32 %v696, %v353
    %v747 = vadd.f32 %v700, %v353
    %v748 = vadd.f32 %v704, %v353
    %v749 = vadd.f32 %v708, %v353
    %v750 = vadd.f32 %v712, %v353
    %v751 = vadd.f32 %v716, %v353
    %v752 = vadd.f32 %v720, %v353
    %v753 = vadd.f32 %v737, %v495
    %v754 = vadd.f32 %v738, %v498
    %v755 = vadd.f32 %v739, %v503
    %v756 = vadd.f32 %v740, %v506
    %v757 = vadd.f32 %v741, %v511
    %v758 = vadd.f32 %v742, %v514
    %v759 = vadd.f32 %v743, %v519
    %v760 = vadd.f32 %v744, %v522
    %v761 = vadd.f32 %v745, %v527
    %v762 = vadd.f32 %v746, %v530
    %v763 = vadd.f32 %v747, %v535
    %v764 = vadd.f32 %v748, %v538
    %v765 = vadd.f32 %v749, %v543
    %v766 = vadd.f32 %v750, %v546
    %v767 = vadd.f32 %v751, %v551
    %v768 = vadd.f32 %v752, %v554
    %v769 = vmax.f32 %v753, 0.0
    %v770 = vmax.f32 %v754, 0.0
    %v771 = vmax.f32 %v755, 0.0
    %v772 = vmax.f32 %v756, 0.0
    %v773 = vmax.f32 %v757, 0.0
    %v774 = vmax.f32 %v758, 0.0
    %v775 = vmax.f32 %v759, 0.0
    %v776 = vmax.f32 %v760, 0.0
    %v777 = vmax.f32 %v761, 0.0
    %v778 = vmax.f32 %v762, 0.0
    %v779 = vmax.f32 %v763, 0.0
    %v780 = vmax.f32 %v764, 0.0
    %v781 = vmax.f32 %v765, 0.0
    %v782 = vmax.f32 %v766, 0.0
    %v783 = vmax.f32 %v767, 0.0
    %v784 = vmax.f32 %v768, 0.0
    %v785 = vadd.f32 %v769, %v101
    %v786 = vadd.f32 %v770, %v102
    %v787 = vadd.f32 %v771, %v103
    %v788 = vadd.f32 %v772, %v104
    %v789 = vadd.f32 %v773, %v105
    %v790 = vadd.f32 %v774, %v106
    %v791 = vadd.f32 %v775, %v107
    %v792 = vadd.f32 %v776, %v108
    %v793 = vadd.f32 %v777, %v109
    %v794 = vadd.f32 %v778, %v110
    %v795 = vadd.f32 %v779, %v111
    %v796 = vadd.f32 %v780, %v112
    %v797 = vadd.f32 %v781, %v113
    %v798 = vadd.f32 %v782, %v114
    %v799 = vadd.f32 %v783, %v115
    %v800 = vadd.f32 %v784, %v116
    %v801 = vrot.slane %v785, 4
    %v802 = vadd.f32 %v785, %v801
    %v803 = vrot.slane %v802, 2
    %v804 = vadd.f32 %v802, %v803
    %v805 = vrot.slane %v804, 1
    %v806 = vadd.f32 %v804, %v805
    %v807 = vrot.slane %v786, 4
    %v808 = vadd.f32 %v786, %v807
    %v809 = vrot.slane %v808, 2
    %v810 = vadd.f32 %v808, %v809
    %v811 = vrot.slane %v810, 1
    %v812 = vadd.f32 %v810, %v811
    %v813 = vrot.slane %v787, 4
    %v814 = vadd.f32 %v787, %v813
    %v815 = vrot.slane %v814, 2
    %v816 = vadd.f32 %v814, %v815
    %v817 = vrot.slane %v816, 1
    %v818 = vadd.f32 %v816, %v817
    %v819 = vrot.slane %v788, 4
    %v820 = vadd.f32 %v788, %v819
    %v821 = vrot.slane %v820, 2
    %v822 = vadd.f32 %v820, %v821
    %v823 = vrot.slane %v822, 1
    %v824 = vadd.f32 %v822, %v823
    %v825 = vrot.slane %v789, 4
    %v826 = vadd.f32 %v789, %v825
    %v827 = vrot.slane %v826, 2
    %v828 = vadd.f32 %v826, %v827
    %v829 = vrot.slane %v828, 1
    %v830 = vadd.f32 %v828, %v829
    %v831 = vrot.slane %v790, 4
    %v832 = vadd.f32 %v790, %v831
    %v833 = vrot.slane %v832, 2
    %v834 = vadd.f32 %v832, %v833
    %v835 = vrot.slane %v834, 1
    %v836 = vadd.f32 %v834, %v835
    %v837 = vrot.slane %v791, 4
    %v838 = vadd.f32 %v791, %v837
    %v839 = vrot.slane %v838, 2
    %v840 = vadd.f32 %v838, %v839
    %v841 = vrot.slane %v840, 1
    %v842 = vadd.f32 %v840, %v841
    %v843 = vrot.slane %v792, 4
    %v844 = vadd.f32 %v792, %v843
    %v845 = vrot.slane %v844, 2
    %v846 = vadd.f32 %v844, %v845
    %v847 = vrot.slane %v846, 1
    %v848 = vadd.f32 %v846, %v847
    %v849 = vrot.slane %v793, 4
    %v850 = vadd.f32 %v793, %v849
    %v851 = vrot.slane %v850, 2
    %v852 = vadd.f32 %v850, %v851
    %v853 = vrot.slane %v852, 1
    %v854 = vadd.f32 %v852, %v853
    %v855 = vrot.slane %v794, 4
    %v856 = vadd.f32 %v794, %v855
    %v857 = vrot.slane %v856, 2
    %v858 = vadd.f32 %v856, %v857
    %v859 = vrot.slane %v858, 1
    %v860 = vadd.f32 %v858, %v859
    %v861 = vrot.slane %v795, 4
    %v862 = vadd.f32 %v795, %v861
    %v863 = vrot.slane %v862, 2
    %v864 = vadd.f32 %v862, %v863
    %v865 = vrot.slane %v864, 1
    %v866 = vadd.f32 %v864, %v865
    %v867 = vrot.slane %v796, 4
    %v868 = vadd.f32 %v796, %v867
    %v869 = vrot.slane %v868, 2
    %v870 = vadd.f32 %v868, %v869
    %v871 = vrot.slane %v870, 1
    %v872 = vadd.f32 %v870, %v871
    %v873 = vrot.slane %v797, 4
    %v874 = vadd.f32 %v797, %v873
    %v875 = vrot.slane %v874, 2
    %v876 = vadd.f32 %v874, %v875
    %v877 = vrot.slane %v876, 1
    %v878 = vadd.f32 %v876, %v877
    %v879 = vrot.slane %v798, 4
    %v880 = vadd.f32 %v798, %v879
    %v881 = vrot.slane %v880, 2
    %v882 = vadd.f32 %v880, %v881
    %v883 = vrot.slane %v882, 1
    %v884 = vadd.f32 %v882, %v883
    %v885 = vrot.slane %v799, 4
    %v886 = vadd.f32 %v799, %v885
    %v887 = vrot.slane %v886, 2
    %v888 = vadd.f32 %v886, %v887
    %v889 = vrot.slane %v888, 1
    %v890 = vadd.f32 %v888, %v889
    %v891 = vrot.slane %v800, 4
    %v892 = vadd.f32 %v800, %v891
    %v893 = vrot.slane %v892, 2
    %v894 = vadd.f32 %v892, %v893
    %v895 = vrot.slane %v894, 1
    %v896 = vadd.f32 %v894, %v895
    %v897 = vpack.c.bf16 %v806, %v806
    %v898 = vpack.c.bf16 %v812, %v812
    %v899 = vpack.c.bf16 %v818, %v818
    %v900 = vpack.c.bf16 %v824, %v824
    %v901 = vpack.c.bf16 %v830, %v830
    %v902 = vpack.c.bf16 %v836, %v836
    %v903 = vpack.c.bf16 %v842, %v842
    %v904 = vpack.c.bf16 %v848, %v848
    %v905 = vpack.c.bf16 %v854, %v854
    %v906 = vpack.c.bf16 %v860, %v860
    %v907 = vpack.c.bf16 %v866, %v866
    %v908 = vpack.c.bf16 %v872, %v872
    %v909 = vpack.c.bf16 %v878, %v878
    %v910 = vpack.c.bf16 %v884, %v884
    %v911 = vpack.c.bf16 %v890, %v890
    %v912 = vpack.c.bf16 %v896, %v896
    %v929 = vunpack.c.l.b16 %v897
    %v930 = vunpack.c.l.b16 %v898
    %v931 = vunpack.c.l.b16 %v899
    %v932 = vunpack.c.l.b16 %v900
    %v933 = vunpack.c.l.b16 %v901
    %v934 = vunpack.c.l.b16 %v902
    %v935 = vunpack.c.l.b16 %v903
    %v936 = vunpack.c.l.b16 %v904
    %v937 = vunpack.c.l.b16 %v905
    %v938 = vunpack.c.l.b16 %v906
    %v939 = vunpack.c.l.b16 %v907
    %v940 = vunpack.c.l.b16 %v908
    %v941 = vunpack.c.l.b16 %v909
    %v942 = vunpack.c.l.b16 %v910
    %v943 = vunpack.c.l.b16 %v911
    %v944 = vunpack.c.l.b16 %v912
    %vm945 = vcmask 1041409
    %v946 = vsel %vm945, %v930, %v929
    %vm947 = vcmask 1042434
    %v948 = vsel %vm947, %v931, %v946
    %vm949 = vcmask 1043459
    %v950 = vsel %vm949, %v932, %v948
    %vm951 = vcmask 1044484
    %v952 = vsel %vm951, %v933, %v950
    %vm953 = vcmask 1045509
    %v954 = vsel %vm953, %v934, %v952
    %vm955 = vcmask 1046534
    %v956 = vsel %vm955, %v935, %v954
    %vm957 = vcmask 1047559
    %v958 = vsel %vm957, %v936, %v956
    %v959 = vsel %vm945, %v938, %v937
    %v960 = vsel %vm947, %v939, %v959
    %v961 = vsel %vm949, %v940, %v960
    %v962 = vsel %vm951, %v941, %v961
    %v963 = vsel %vm953, %v942, %v962
    %v964 = vsel %vm955, %v943, %v963
    %v965 = vsel %vm957, %v944, %v964
    %v966 = vpack.c.b16 %v965, %v958
    %v984 = vunpack.c.l.b16 %v165
    %v985 = vunpack.c.l.b16 %v166
    %v986 = vunpack.c.l.b16 %v167
    %v987 = vunpack.c.l.b16 %v168
    %v988 = vunpack.c.l.b16 %v169
    %v989 = vunpack.c.l.b16 %v170
    %v990 = vunpack.c.l.b16 %v171
    %v991 = vunpack.c.l.b16 %v172
    %v992 = vunpack.c.l.b16 %v173
    %v993 = vunpack.c.l.b16 %v174
    %v994 = vunpack.c.l.b16 %v175
    %v995 = vunpack.c.l.b16 %v176
    %v996 = vunpack.c.l.b16 %v177
    %v997 = vunpack.c.l.b16 %v178
    %v998 = vunpack.c.l.b16 %v179
    %v999 = vunpack.c.l.b16 %v180
    %v1000 = vpack.c.b16 %v985, %v984
    %v1001 = vpack.c.b16 %v987, %v986
    %v1002 = vpack.c.b16 %v989, %v988
    %v1003 = vpack.c.b16 %v991, %v990
    %v1004 = vpack.c.b16 %v993, %v992
    %v1005 = vpack.c.b16 %v995, %v994
    %v1006 = vpack.c.b16 %v997, %v996
    %v1007 = vpack.c.b16 %v999, %v998
    %1016 = vmatprep.subr.bf16.mxu0 0
    %1017 = vmatpush1.bf16.msra.mxu0 %v1000
    %1018 = vmatprep.subr.bf16.mxu0 0
    %1019 = vmatpush1.bf16.msra.mxu0 %v1001
    %1020 = vmatprep.subr.bf16.mxu0 0
    %1021 = vmatpush1.bf16.msra.mxu0 %v1002
    %1022 = vmatprep.subr.bf16.mxu0 0
    %1023 = vmatpush1.bf16.msra.mxu0 %v1003
    %1024 = vmatprep.subr.bf16.mxu0 0
    %1025 = vmatpush1.bf16.msra.mxu0 %v1004
    %1026 = vmatprep.subr.bf16.mxu0 0
    %1027 = vmatpush1.bf16.msra.mxu0 %v1005
    %1028 = vmatprep.subr.bf16.mxu0 0
    %1029 = vmatpush1.bf16.msra.mxu0 %v1006
    %1030 = vmatprep.subr.bf16.mxu0 0
    %1031 = vmatpush1.bf16.msra.mxu0 %v1007
    %1032 = vmatprep.subr.bf16.mxu0 0
    %1033 = vmatpush1.bf16.msra.mxu0 0
    %1034 = vmatprep.subr.bf16.mxu0 0
    %1035 = vmatpush1.bf16.msra.mxu0 0
    %1036 = vmatprep.subr.bf16.mxu0 0
    %1037 = vmatpush1.bf16.msra.mxu0 0
    %1038 = vmatprep.subr.bf16.mxu0 0
    %1039 = vmatpush1.bf16.msra.mxu0 0
    %1040 = vmatprep.subr.bf16.mxu0 0
    %1041 = vmatpush1.bf16.msra.mxu0 0
    %1042 = vmatprep.subr.bf16.mxu0 0
    %1043 = vmatpush1.bf16.msra.mxu0 0
    %1044 = vmatprep.subr.bf16.mxu0 0
    %1045 = vmatpush1.bf16.msra.mxu0 0
    %1046 = vmatprep.subr.bf16.mxu0 0
    %1047 = vmatpush1.bf16.msra.mxu0 0
    %1048 = vmatprep.mubr.bf16.mxu0 0
    %1049 = vmatmul.mubr.bf16.gmra.mrb[0].mxu0 %v966
    %v1050 = vpop.f32.mrb[0].mxu0
    %v1051 = vadd.f32 0.0, %v1050
    %v1052 = vpop.f32.mrb[0].mxu0
    %v1053 = vpop.f32.mrb[0].mxu0
    %v1054 = vadd.f32 0.0, %v1053
    %v1055 = vpop.f32.mrb[0].mxu0
    %1056 = vdwg.mxu0
    %v1057 = vadd.f32 %v390, %v1051
    %v1058 = vadd.f32 %v393, %v1054
    %v1060 = vlaneseq
    %v1061 = vshrl.u32 %v1060, 7
    %v1062 = vsub.s32 0, %v1061
    %v1063 = vrot.slane %v182, %v1062
    %v1065 = vadd.f32 %v1057, %v1063
    %v1066 = vadd.f32 %v1058, %v1063
    %v1067 = vmax.f32 %v1065, 0.0
    %v1068 = vmax.f32 %v1066, 0.0
    %v1069 = vadd.f32 %v1067, %v99
    %v1070 = vadd.f32 %v1068, %v100
    %s1071 = scalar_lea.vmem [#allocation7], 192
    %v1072 = vld [vmem:[%s1071] sm:$0xff]
    %v1073 = vld [vmem:[%s1071 + $0x8] sm:$0xf]
    %v1074 = vld [vmem:[%s1071 + $0xc] sm:$0xff]
    %v1075 = vld [vmem:[%s1071 + $0x14] sm:$0xf]
    %v1076 = vld [vmem:[%s1071 + $0x18] sm:$0xff]
    %v1077 = vld [vmem:[%s1071 + $0x20] sm:$0xf]
    %v1078 = vld [vmem:[%s1071 + $0x24] sm:$0xff]
    %v1079 = vld [vmem:[%s1071 + $0x2c] sm:$0xf]
    %v1080 = vld [vmem:[%s1071 + $0x30] sm:$0xff]
    %v1081 = vld [vmem:[%s1071 + $0x38] sm:$0xf]
    %v1082 = vld [vmem:[%s1071 + $0x3c] sm:$0xff]
    %v1083 = vld [vmem:[%s1071 + $0x44] sm:$0xf]
    %v1084 = vld [vmem:[%s1071 + $0x48] sm:$0xff]
    %v1085 = vld [vmem:[%s1071 + $0x50] sm:$0xf]
    %v1086 = vld [vmem:[%s1071 + $0x54] sm:$0xff]
    %v1087 = vld [vmem:[%s1071 + $0x5c] sm:$0xf]
    %v1088 = vld [vmem:[%s1071 + $0x60] sm:$0xff]
    %v1089 = vld [vmem:[%s1071 + $0x68] sm:$0xf]
    %v1090 = vld [vmem:[%s1071 + $0x6c] sm:$0xff]
    %v1091 = vld [vmem:[%s1071 + $0x74] sm:$0xf]
    %v1092 = vld [vmem:[%s1071 + $0x78] sm:$0xff]
    %v1093 = vld [vmem:[%s1071 + $0x80] sm:$0xf]
    %v1094 = vld [vmem:[%s1071 + $0x84] sm:$0xff]
    %v1095 = vld [vmem:[%s1071 + $0x8c] sm:$0xf]
    %v1096 = vld [vmem:[%s1071 + $0x90] sm:$0xff]
    %v1097 = vld [vmem:[%s1071 + $0x98] sm:$0xf]
    %v1098 = vld [vmem:[%s1071 + $0x9c] sm:$0xff]
    %v1099 = vld [vmem:[%s1071 + $0xa4] sm:$0xf]
    %v1100 = vld [vmem:[%s1071 + $0xa8] sm:$0xff]
    %v1101 = vld [vmem:[%s1071 + $0xb0] sm:$0xf]
    %v1102 = vld [vmem:[%s1071 + $0xb4] sm:$0xff]
    %v1103 = vld [vmem:[%s1071 + $0xbc] sm:$0xf]
    %s1104 = scalar_lea.vmem [#allocation8], 64
    %v1105 = vld [vmem:[%s1104] sm:$0xf]
    %v1106 = vld [vmem:[%s1104 + $0x4] sm:$0xf]
    %v1107 = vld [vmem:[%s1104 + $0x8] sm:$0xf]
    %v1108 = vld [vmem:[%s1104 + $0xc] sm:$0xf]
    %v1109 = vld [vmem:[%s1104 + $0x10] sm:$0xf]
    %v1110 = vld [vmem:[%s1104 + $0x14] sm:$0xf]
    %v1111 = vld [vmem:[%s1104 + $0x18] sm:$0xf]
    %v1112 = vld [vmem:[%s1104 + $0x1c] sm:$0xf]
    %v1113 = vld [vmem:[%s1104 + $0x20] sm:$0xf]
    %v1114 = vld [vmem:[%s1104 + $0x24] sm:$0xf]
    %v1115 = vld [vmem:[%s1104 + $0x28] sm:$0xf]
    %v1116 = vld [vmem:[%s1104 + $0x2c] sm:$0xf]
    %v1117 = vld [vmem:[%s1104 + $0x30] sm:$0xf]
    %v1118 = vld [vmem:[%s1104 + $0x34] sm:$0xf]
    %v1119 = vld [vmem:[%s1104 + $0x38] sm:$0xf]
    %v1120 = vld [vmem:[%s1104 + $0x3c] sm:$0xf]
    %s1121 = scalar_lea.vmem [#allocation10], 64
    %v1122 = vld [vmem:[%s1121] sm:$0xf]
    %v1123 = vld [vmem:[%s1121 + $0x4] sm:$0xf]
    %v1124 = vld [vmem:[%s1121 + $0x8] sm:$0xf]
    %v1125 = vld [vmem:[%s1121 + $0xc] sm:$0xf]
    %v1126 = vld [vmem:[%s1121 + $0x10] sm:$0xf]
    %v1127 = vld [vmem:[%s1121 + $0x14] sm:$0xf]
    %v1128 = vld [vmem:[%s1121 + $0x18] sm:$0xf]
    %v1129 = vld [vmem:[%s1121 + $0x1c] sm:$0xf]
    %v1130 = vld [vmem:[%s1121 + $0x20] sm:$0xf]
    %v1131 = vld [vmem:[%s1121 + $0x24] sm:$0xf]
    %v1132 = vld [vmem:[%s1121 + $0x28] sm:$0xf]
    %v1133 = vld [vmem:[%s1121 + $0x2c] sm:$0xf]
    %v1134 = vld [vmem:[%s1121 + $0x30] sm:$0xf]
    %v1135 = vld [vmem:[%s1121 + $0x34] sm:$0xf]
    %v1136 = vld [vmem:[%s1121 + $0x38] sm:$0xf]
    %v1137 = vld [vmem:[%s1121 + $0x3c] sm:$0xf]
    %s1138 = scalar_lea.vmem %s4, 1
    %v1139 = vld [vmem:[%s1138] sm:$0x1]
    %s1140 = scalar_lea.vmem %s6, 1
    %v1141 = vld [vmem:[%s1140] sm:$0x1]
    %v1142 = vpack.c.bf16 %v1070, %v1069
    %v1175 = vunpack.c.l.b16 %v1072
    %v1176 = vunpack.c.h.b16 %v1072
    %v1177 = vunpack.c.l.b16 %v1073
    %v1178 = vunpack.c.l.b16 %v1074
    %v1179 = vunpack.c.h.b16 %v1074
    %v1180 = vunpack.c.l.b16 %v1075
    %v1181 = vunpack.c.l.b16 %v1076
    %v1182 = vunpack.c.h.b16 %v1076
    %v1183 = vunpack.c.l.b16 %v1077
    %v1184 = vunpack.c.l.b16 %v1078
    %v1185 = vunpack.c.h.b16 %v1078
    %v1186 = vunpack.c.l.b16 %v1079
    %v1187 = vunpack.c.l.b16 %v1080
    %v1188 = vunpack.c.h.b16 %v1080
    %v1189 = vunpack.c.l.b16 %v1081
    %v1190 = vunpack.c.l.b16 %v1082
    %v1191 = vunpack.c.h.b16 %v1082
    %v1192 = vunpack.c.l.b16 %v1083
    %v1193 = vunpack.c.l.b16 %v1084
    %v1194 = vunpack.c.h.b16 %v1084
    %v1195 = vunpack.c.l.b16 %v1085
    %v1196 = vunpack.c.l.b16 %v1086
    %v1197 = vunpack.c.h.b16 %v1086
    %v1198 = vunpack.c.l.b16 %v1087
    %v1199 = vunpack.c.l.b16 %v1088
    %v1200 = vunpack.c.h.b16 %v1088
    %v1201 = vunpack.c.l.b16 %v1089
    %v1202 = vunpack.c.l.b16 %v1090
    %v1203 = vunpack.c.h.b16 %v1090
    %v1204 = vunpack.c.l.b16 %v1091
    %v1205 = vunpack.c.l.b16 %v1092
    %v1206 = vunpack.c.h.b16 %v1092
    %v1207 = vunpack.c.l.b16 %v1093
    %v1208 = vunpack.c.l.b16 %v1094
    %v1209 = vunpack.c.h.b16 %v1094
    %v1210 = vunpack.c.l.b16 %v1095
    %v1211 = vunpack.c.l.b16 %v1096
    %v1212 = vunpack.c.h.b16 %v1096
    %v1213 = vunpack.c.l.b16 %v1097
    %v1214 = vunpack.c.l.b16 %v1098
    %v1215 = vunpack.c.h.b16 %v1098
    %v1216 = vunpack.c.l.b16 %v1099
    %v1217 = vunpack.c.l.b16 %v1100
    %v1218 = vunpack.c.h.b16 %v1100
    %v1219 = vunpack.c.l.b16 %v1101
    %v1220 = vunpack.c.l.b16 %v1102
    %v1221 = vunpack.c.h.b16 %v1102
    %v1222 = vunpack.c.l.b16 %v1103
    %v1223 = vpack.c.b16 %v1178, %v1175
    %v1224 = vpack.c.b16 %v1179, %v1176
    %v1225 = vpack.c.b16 %v1180, %v1177
    %v1226 = vpack.c.b16 %v1184, %v1181
    %v1227 = vpack.c.b16 %v1185, %v1182
    %v1228 = vpack.c.b16 %v1186, %v1183
    %v1229 = vpack.c.b16 %v1190, %v1187
    %v1230 = vpack.c.b16 %v1191, %v1188
    %v1231 = vpack.c.b16 %v1192, %v1189
    %v1232 = vpack.c.b16 %v1196, %v1193
    %v1233 = vpack.c.b16 %v1197, %v1194
    %v1234 = vpack.c.b16 %v1198, %v1195
    %v1235 = vpack.c.b16 %v1202, %v1199
    %v1236 = vpack.c.b16 %v1203, %v1200
    %v1237 = vpack.c.b16 %v1204, %v1201
    %v1238 = vpack.c.b16 %v1208, %v1205
    %v1239 = vpack.c.b16 %v1209, %v1206
    %v1240 = vpack.c.b16 %v1210, %v1207
    %v1241 = vpack.c.b16 %v1214, %v1211
    %v1242 = vpack.c.b16 %v1215, %v1212
    %v1243 = vpack.c.b16 %v1216, %v1213
    %v1244 = vpack.c.b16 %v1220, %v1217
    %v1245 = vpack.c.b16 %v1221, %v1218
    %v1246 = vpack.c.b16 %v1222, %v1219
    %1271 = vmatprep.subr.bf16.mxu0 %v1224
    %1272 = vmatpush1.bf16.msra.mxu0 %v1223
    %1273 = vmatprep.subr.bf16.mxu0 %v1227
    %1274 = vmatpush1.bf16.msra.mxu0 %v1226
    %1275 = vmatprep.subr.bf16.mxu0 %v1230
    %1276 = vmatpush1.bf16.msra.mxu0 %v1229
    %1277 = vmatprep.subr.bf16.mxu0 %v1233
    %1278 = vmatpush1.bf16.msra.mxu0 %v1232
    %1279 = vmatprep.subr.bf16.mxu0 %v1236
    %1280 = vmatpush1.bf16.msra.mxu0 %v1235
    %1281 = vmatprep.subr.bf16.mxu0 %v1239
    %1282 = vmatpush1.bf16.msra.mxu0 %v1238
    %1283 = vmatprep.subr.bf16.mxu0 %v1242
    %1284 = vmatpush1.bf16.msra.mxu0 %v1241
    %1285 = vmatprep.subr.bf16.mxu0 %v1245
    %1286 = vmatpush1.bf16.msra.mxu0 %v1244
    %1287 = vmatprep.subr.bf16.mxu0 0
    %1288 = vmatpush1.bf16.msra.mxu0 0
    %1289 = vmatprep.subr.bf16.mxu0 0
    %1290 = vmatpush1.bf16.msra.mxu0 0
    %1291 = vmatprep.subr.bf16.mxu0 0
    %1292 = vmatpush1.bf16.msra.mxu0 0
    %1293 = vmatprep.subr.bf16.mxu0 0
    %1294 = vmatpush1.bf16.msra.mxu0 0
    %1295 = vmatprep.subr.bf16.mxu0 0
    %1296 = vmatpush1.bf16.msra.mxu0 0
    %1297 = vmatprep.subr.bf16.mxu0 0
    %1298 = vmatpush1.bf16.msra.mxu0 0
    %1299 = vmatprep.subr.bf16.mxu0 0
    %1300 = vmatpush1.bf16.msra.mxu0 0
    %1301 = vmatprep.subr.bf16.mxu0 0
    %1302 = vmatpush1.bf16.msra.mxu0 0
    %1303 = vmatprep.mubr.bf16.mxu0 0
    %1304 = vmatmul.mubr.bf16.gmra.mrb[0].mxu0 %v1142
    %v1305 = vpop.f32.mrb[0].mxu0
    %v1306 = vadd.f32 0.0, %v1305
    %v1307 = vpop.f32.mrb[0].mxu0
    %v1308 = vadd.f32 0.0, %v1307
    %v1309 = vpop.f32.mrb[0].mxu0
    %v1310 = vadd.f32 0.0, %v1309
    %v1311 = vpop.f32.mrb[0].mxu0
    %v1312 = vadd.f32 0.0, %v1311
    %1313 = vdwg.mxu0
    %1314 = vmatprep.subr.bf16.mxu0 0
    %1315 = vmatpush1.bf16.msra.mxu0 %v1225
    %1316 = vmatprep.subr.bf16.mxu0 0
    %1317 = vmatpush1.bf16.msra.mxu0 %v1228
    %1318 = vmatprep.subr.bf16.mxu0 0
    %1319 = vmatpush1.bf16.msra.mxu0 %v1231
    %1320 = vmatprep.subr.bf16.mxu0 0
    %1321 = vmatpush1.bf16.msra.mxu0 %v1234
    %1322 = vmatprep.subr.bf16.mxu0 0
    %1323 = vmatpush1.bf16.msra.mxu0 %v1237
    %1324 = vmatprep.subr.bf16.mxu0 0
    %1325 = vmatpush1.bf16.msra.mxu0 %v1240
    %1326 = vmatprep.subr.bf16.mxu0 0
    %1327 = vmatpush1.bf16.msra.mxu0 %v1243
    %1328 = vmatprep.subr.bf16.mxu0 0
    %1329 = vmatpush1.bf16.msra.mxu0 %v1246
    %1330 = vmatprep.subr.bf16.mxu0 0
    %1331 = vmatpush1.bf16.msra.mxu0 0
    %1332 = vmatprep.subr.bf16.mxu0 0
    %1333 = vmatpush1.bf16.msra.mxu0 0
    %1334 = vmatprep.subr.bf16.mxu0 0
    %1335 = vmatpush1.bf16.msra.mxu0 0
    %1336 = vmatprep.subr.bf16.mxu0 0
    %1337 = vmatpush1.bf16.msra.mxu0 0
    %1338 = vmatprep.subr.bf16.mxu0 0
    %1339 = vmatpush1.bf16.msra.mxu0 0
    %1340 = vmatprep.subr.bf16.mxu0 0
    %1341 = vmatpush1.bf16.msra.mxu0 0
    %1342 = vmatprep.subr.bf16.mxu0 0
    %1343 = vmatpush1.bf16.msra.mxu0 0
    %1344 = vmatprep.subr.bf16.mxu0 0
    %1345 = vmatpush1.bf16.msra.mxu0 0
    %1346 = vmatprep.mubr.bf16.mxu0 0
    %1347 = vmatmul.mubr.bf16.gmra.mrb[0].mxu0 %v1142
    %v1348 = vpop.f32.mrb[0].mxu0
    %v1349 = vadd.f32 0.0, %v1348
    %v1350 = vpop.f32.mrb[0].mxu0
    %v1351 = vpop.f32.mrb[0].mxu0
    %v1352 = vadd.f32 0.0, %v1351
    %v1353 = vpop.f32.mrb[0].mxu0
    %1354 = vdwg.mxu0
    %v1356 = vlaneseq
    %v1357 = vshrl.u32 %v1356, 7
    %v1358 = vsub.s32 0, %v1357
    %v1359 = vrot.slane %v1139, %v1358
    %v1361 = vadd.f32 %v1306, %v1359
    %v1362 = vadd.f32 %v1310, %v1359
    %v1363 = vpack.c.bf16 %v786, %v785
    %v1364 = vpack.c.bf16 %v788, %v787
    %v1365 = vpack.c.bf16 %v790, %v789
    %v1366 = vpack.c.bf16 %v792, %v791
    %v1367 = vpack.c.bf16 %v794, %v793
    %v1368 = vpack.c.bf16 %v796, %v795
    %v1369 = vpack.c.bf16 %v798, %v797
    %v1370 = vpack.c.bf16 %v800, %v799
    %v1387 = vunpack.c.l.b16 %v1105
    %v1388 = vunpack.c.l.b16 %v1106
    %v1389 = vunpack.c.l.b16 %v1107
    %v1390 = vunpack.c.l.b16 %v1108
    %v1391 = vunpack.c.l.b16 %v1109
    %v1392 = vunpack.c.l.b16 %v1110
    %v1393 = vunpack.c.l.b16 %v1111
    %v1394 = vunpack.c.l.b16 %v1112
    %v1395 = vunpack.c.l.b16 %v1113
    %v1396 = vunpack.c.l.b16 %v1114
    %v1397 = vunpack.c.l.b16 %v1115
    %v1398 = vunpack.c.l.b16 %v1116
    %v1399 = vunpack.c.l.b16 %v1117
    %v1400 = vunpack.c.l.b16 %v1118
    %v1401 = vunpack.c.l.b16 %v1119
    %v1402 = vunpack.c.l.b16 %v1120
    %v1403 = vpack.c.b16 %v1388, %v1387
    %v1404 = vpack.c.b16 %v1390, %v1389
    %v1405 = vpack.c.b16 %v1392, %v1391
    %v1406 = vpack.c.b16 %v1394, %v1393
    %v1407 = vpack.c.b16 %v1396, %v1395
    %v1408 = vpack.c.b16 %v1398, %v1397
    %v1409 = vpack.c.b16 %v1400, %v1399
    %v1410 = vpack.c.b16 %v1402, %v1401
    %1419 = vmatprep.subr.bf16.mxu0 0
    %1420 = vmatpush1.bf16.msra.mxu0 %v1403
    %1421 = vmatprep.subr.bf16.mxu0 0
    %1422 = vmatpush1.bf16.msra.mxu0 %v1404
    %1423 = vmatprep.subr.bf16.mxu0 0
    %1424 = vmatpush1.bf16.msra.mxu0 %v1405
    %1425 = vmatprep.subr.bf16.mxu0 0
    %1426 = vmatpush1.bf16.msra.mxu0 %v1406
    %1427 = vmatprep.subr.bf16.mxu0 0
    %1428 = vmatpush1.bf16.msra.mxu0 %v1407
    %1429 = vmatprep.subr.bf16.mxu0 0
    %1430 = vmatpush1.bf16.msra.mxu0 %v1408
    %1431 = vmatprep.subr.bf16.mxu0 0
    %1432 = vmatpush1.bf16.msra.mxu0 %v1409
    %1433 = vmatprep.subr.bf16.mxu0 0
    %1434 = vmatpush1.bf16.msra.mxu0 %v1410
    %1435 = vmatprep.subr.bf16.mxu0 0
    %1436 = vmatpush1.bf16.msra.mxu0 0
    %1437 = vmatprep.subr.bf16.mxu0 0
    %1438 = vmatpush1.bf16.msra.mxu0 0
    %1439 = vmatprep.subr.bf16.mxu0 0
    %1440 = vmatpush1.bf16.msra.mxu0 0
    %1441 = vmatprep.subr.bf16.mxu0 0
    %1442 = vmatpush1.bf16.msra.mxu0 0
    %1443 = vmatprep.subr.bf16.mxu0 0
    %1444 = vmatpush1.bf16.msra.mxu0 0
    %1445 = vmatprep.subr.bf16.mxu0 0
    %1446 = vmatpush1.bf16.msra.mxu0 0
    %1447 = vmatprep.subr.bf16.mxu0 0
    %1448 = vmatpush1.bf16.msra.mxu0 0
    %1449 = vmatprep.subr.bf16.mxu0 0
    %1450 = vmatpush1.bf16.msra.mxu0 0
    %1451 = vmatprep.mubr.bf16.mxu0 0
    %1452 = vmatmul.mubr.bf16.gmra.mrb[0].mxu0 %v1363
    %v1453 = vpop.f32.mrb[0].mxu0
    %v1454 = vadd.f32 0.0, %v1453
    %v1455 = vpop.f32.mrb[0].mxu0
    %v1456 = vpop.f32.mrb[0].mxu0
    %v1457 = vadd.f32 0.0, %v1456
    %v1458 = vpop.f32.mrb[0].mxu0
    %1459 = vmatprep.mubr.bf16.mxu0 0
    %1460 = vmatmul.mubr.bf16.gmra.mrb[0].mxu0 %v1364
    %v1461 = vpop.f32.mrb[0].mxu0
    %v1462 = vadd.f32 0.0, %v1461
    %v1463 = vpop.f32.mrb[0].mxu0
    %v1464 = vpop.f32.mrb[0].mxu0
    %v1465 = vadd.f32 0.0, %v1464
    %v1466 = vpop.f32.mrb[0].mxu0
    %1467 = vmatprep.mubr.bf16.mxu0 0
    %1468 = vmatmul.mubr.bf16.gmra.mrb[0].mxu0 %v1365
    %v1469 = vpop.f32.mrb[0].mxu0
    %v1470 = vadd.f32 0.0, %v1469
    %v1471 = vpop.f32.mrb[0].mxu0
    %v1472 = vpop.f32.mrb[0].mxu0
    %v1473 = vadd.f32 0.0, %v1472
    %v1474 = vpop.f32.mrb[0].mxu0
    %1475 = vmatprep.mubr.bf16.mxu0 0
    %1476 = vmatmul.mubr.bf16.gmra.mrb[0].mxu0 %v1366
    %v1477 = vpop.f32.mrb[0].mxu0
    %v1478 = vadd.f32 0.0, %v1477
    %v1479 = vpop.f32.mrb[0].mxu0
    %v1480 = vpop.f32.mrb[0].mxu0
    %v1481 = vadd.f32 0.0, %v1480
    %v1482 = vpop.f32.mrb[0].mxu0
    %1483 = vmatprep.mubr.bf16.mxu0 0
    %1484 = vmatmul.mubr.bf16.gmra.mrb[0].mxu0 %v1367
    %v1485 = vpop.f32.mrb[0].mxu0
    %v1486 = vadd.f32 0.0, %v1485
    %v1487 = vpop.f32.mrb[0].mxu0
    %v1488 = vpop.f32.mrb[0].mxu0
    %v1489 = vadd.f32 0.0, %v1488
    %v1490 = vpop.f32.mrb[0].mxu0
    %1491 = vmatprep.mubr.bf16.mxu0 0
    %1492 = vmatmul.mubr.bf16.gmra.mrb[0].mxu0 %v1368
    %v1493 = vpop.f32.mrb[0].mxu0
    %v1494 = vadd.f32 0.0, %v1493
    %v1495 = vpop.f32.mrb[0].mxu0
    %v1496 = vpop.f32.mrb[0].mxu0
    %v1497 = vadd.f32 0.0, %v1496
    %v1498 = vpop.f32.mrb[0].mxu0
    %1499 = vmatprep.mubr.bf16.mxu0 0
    %1500 = vmatmul.mubr.bf16.gmra.mrb[0].mxu0 %v1369
    %v1501 = vpop.f32.mrb[0].mxu0
    %v1502 = vadd.f32 0.0, %v1501
    %v1503 = vpop.f32.mrb[0].mxu0
    %v1504 = vpop.f32.mrb[0].mxu0
    %v1505 = vadd.f32 0.0, %v1504
    %v1506 = vpop.f32.mrb[0].mxu0
    %1507 = vmatprep.mubr.bf16.mxu0 0
    %1508 = vmatmul.mubr.bf16.gmra.mrb[0].mxu0 %v1370
    %v1509 = vpop.f32.mrb[0].mxu0
    %v1510 = vadd.f32 0.0, %v1509
    %v1511 = vpop.f32.mrb[0].mxu0
    %v1512 = vpop.f32.mrb[0].mxu0
    %v1513 = vadd.f32 0.0, %v1512
    %v1514 = vpop.f32.mrb[0].mxu0
    %1515 = vdwg.mxu0
    %v1518 = vcombine.high %v1361, %v1361
    %v1520 = vunpack.c.l.s4 1966171168
    %v1521 = vunpack.c.0.s8 %v1520
    %v1522 = vlaneseq
    %v1523 = vshrl.u32 %v1522, 7
    %v1524 = vsub.s32 %v1521, %v1523
    %v1525 = vrot.slane %v1361, %v1524
    %v1527 = vunpack.c.l.s4 1966171168
    %v1528 = vunpack.c.0.s8 %v1527
    %v1529 = vlaneseq
    %v1530 = vshrl.u32 %v1529, 7
    %v1531 = vsub.s32 %v1528, %v1530
    %v1532 = vrot.slane %v1518, %v1531
    %v1533 = vcombine.high %v1525, %v1525
    %v1534 = vcombine.high %v1532, %v1532
    %v1536 = vunpack.c.l.s4 1966171168
    %v1537 = vunpack.c.0.s8 %v1536
    %v1538 = vlaneseq
    %v1539 = vshrl.u32 %v1538, 7
    %v1540 = vsub.s32 %v1537, %v1539
    %v1541 = vrot.slane %v1525, %v1540
    %v1543 = vunpack.c.l.s4 1966171168
    %v1544 = vunpack.c.0.s8 %v1543
    %v1545 = vlaneseq
    %v1546 = vshrl.u32 %v1545, 7
    %v1547 = vsub.s32 %v1544, %v1546
    %v1548 = vrot.slane %v1532, %v1547
    %v1550 = vunpack.c.l.s4 1966171168
    %v1551 = vunpack.c.0.s8 %v1550
    %v1552 = vlaneseq
    %v1553 = vshrl.u32 %v1552, 7
    %v1554 = vsub.s32 %v1551, %v1553
    %v1555 = vrot.slane %v1533, %v1554
    %v1557 = vunpack.c.l.s4 1966171168
    %v1558 = vunpack.c.0.s8 %v1557
    %v1559 = vlaneseq
    %v1560 = vshrl.u32 %v1559, 7
    %v1561 = vsub.s32 %v1558, %v1560
    %v1562 = vrot.slane %v1534, %v1561
    %v1563 = vcombine.high %v1541, %v1541
    %v1564 = vcombine.high %v1548, %v1548
    %v1565 = vcombine.high %v1555, %v1555
    %v1566 = vcombine.high %v1562, %v1562
    %v1567 = vcombine.high %v1362, %v1362
    %v1569 = vunpack.c.l.s4 1966171168
    %v1570 = vunpack.c.0.s8 %v1569
    %v1571 = vlaneseq
    %v1572 = vshrl.u32 %v1571, 7
    %v1573 = vsub.s32 %v1570, %v1572
    %v1574 = vrot.slane %v1362, %v1573
    %v1576 = vunpack.c.l.s4 1966171168
    %v1577 = vunpack.c.0.s8 %v1576
    %v1578 = vlaneseq
    %v1579 = vshrl.u32 %v1578, 7
    %v1580 = vsub.s32 %v1577, %v1579
    %v1581 = vrot.slane %v1567, %v1580
    %v1582 = vcombine.high %v1574, %v1574
    %v1583 = vcombine.high %v1581, %v1581
    %v1585 = vunpack.c.l.s4 1966171168
    %v1586 = vunpack.c.0.s8 %v1585
    %v1587 = vlaneseq
    %v1588 = vshrl.u32 %v1587, 7
    %v1589 = vsub.s32 %v1586, %v1588
    %v1590 = vrot.slane %v1574, %v1589
    %v1592 = vunpack.c.l.s4 1966171168
    %v1593 = vunpack.c.0.s8 %v1592
    %v1594 = vlaneseq
    %v1595 = vshrl.u32 %v1594, 7
    %v1596 = vsub.s32 %v1593, %v1595
    %v1597 = vrot.slane %v1581, %v1596
    %v1599 = vunpack.c.l.s4 1966171168
    %v1600 = vunpack.c.0.s8 %v1599
    %v1601 = vlaneseq
    %v1602 = vshrl.u32 %v1601, 7
    %v1603 = vsub.s32 %v1600, %v1602
    %v1604 = vrot.slane %v1582, %v1603
    %v1606 = vunpack.c.l.s4 1966171168
    %v1607 = vunpack.c.0.s8 %v1606
    %v1608 = vlaneseq
    %v1609 = vshrl.u32 %v1608, 7
    %v1610 = vsub.s32 %v1607, %v1609
    %v1611 = vrot.slane %v1583, %v1610
    %v1612 = vcombine.high %v1590, %v1590
    %v1613 = vcombine.high %v1597, %v1597
    %v1614 = vcombine.high %v1604, %v1604
    %v1615 = vcombine.high %v1611, %v1611
    %v1616 = vlaneseq
    %v1617 = vshrl.u32 %v1616, 7
    %v1618 = vsub.s32 0, %v1617
    %v1619 = vrot.slane %v1541, %v1618
    %v1620 = vlaneseq
    %v1621 = vshrl.u32 %v1620, 7
    %v1622 = vsub.s32 0, %v1621
    %v1623 = vrot.slane %v1555, %v1622
    %v1624 = vlaneseq
    %v1625 = vshrl.u32 %v1624, 7
    %v1626 = vsub.s32 0, %v1625
    %v1627 = vrot.slane %v1563, %v1626
    %v1628 = vlaneseq
    %v1629 = vshrl.u32 %v1628, 7
    %v1630 = vsub.s32 0, %v1629
    %v1631 = vrot.slane %v1565, %v1630
    %v1632 = vlaneseq
    %v1633 = vshrl.u32 %v1632, 7
    %v1634 = vsub.s32 0, %v1633
    %v1635 = vrot.slane %v1548, %v1634
    %v1636 = vlaneseq
    %v1637 = vshrl.u32 %v1636, 7
    %v1638 = vsub.s32 0, %v1637
    %v1639 = vrot.slane %v1562, %v1638
    %v1640 = vlaneseq
    %v1641 = vshrl.u32 %v1640, 7
    %v1642 = vsub.s32 0, %v1641
    %v1643 = vrot.slane %v1564, %v1642
    %v1644 = vlaneseq
    %v1645 = vshrl.u32 %v1644, 7
    %v1646 = vsub.s32 0, %v1645
    %v1647 = vrot.slane %v1566, %v1646
    %v1648 = vlaneseq
    %v1649 = vshrl.u32 %v1648, 7
    %v1650 = vsub.s32 0, %v1649
    %v1651 = vrot.slane %v1590, %v1650
    %v1652 = vlaneseq
    %v1653 = vshrl.u32 %v1652, 7
    %v1654 = vsub.s32 0, %v1653
    %v1655 = vrot.slane %v1604, %v1654
    %v1656 = vlaneseq
    %v1657 = vshrl.u32 %v1656, 7
    %v1658 = vsub.s32 0, %v1657
    %v1659 = vrot.slane %v1612, %v1658
    %v1660 = vlaneseq
    %v1661 = vshrl.u32 %v1660, 7
    %v1662 = vsub.s32 0, %v1661
    %v1663 = vrot.slane %v1614, %v1662
    %v1664 = vlaneseq
    %v1665 = vshrl.u32 %v1664, 7
    %v1666 = vsub.s32 0, %v1665
    %v1667 = vrot.slane %v1597, %v1666
    %v1668 = vlaneseq
    %v1669 = vshrl.u32 %v1668, 7
    %v1670 = vsub.s32 0, %v1669
    %v1671 = vrot.slane %v1611, %v1670
    %v1672 = vlaneseq
    %v1673 = vshrl.u32 %v1672, 7
    %v1674 = vsub.s32 0, %v1673
    %v1675 = vrot.slane %v1613, %v1674
    %v1676 = vlaneseq
    %v1677 = vshrl.u32 %v1676, 7
    %v1678 = vsub.s32 0, %v1677
    %v1679 = vrot.slane %v1615, %v1678
    %v1696 = vadd.f32 %v1619, %v1308
    %v1697 = vadd.f32 %v1623, %v1308
    %v1698 = vadd.f32 %v1627, %v1308
    %v1699 = vadd.f32 %v1631, %v1308
    %v1700 = vadd.f32 %v1635, %v1308
    %v1701 = vadd.f32 %v1639, %v1308
    %v1702 = vadd.f32 %v1643, %v1308
    %v1703 = vadd.f32 %v1647, %v1308
    %v1704 = vadd.f32 %v1651, %v1312
    %v1705 = vadd.f32 %v1655, %v1312
    %v1706 = vadd.f32 %v1659, %v1312
    %v1707 = vadd.f32 %v1663, %v1312
    %v1708 = vadd.f32 %v1667, %v1312
    %v1709 = vadd.f32 %v1671, %v1312
    %v1710 = vadd.f32 %v1675, %v1312
    %v1711 = vadd.f32 %v1679, %v1312
    %v1712 = vadd.f32 %v1696, %v1454
    %v1713 = vadd.f32 %v1697, %v1457
    %v1714 = vadd.f32 %v1698, %v1462
    %v1715 = vadd.f32 %v1699, %v1465
    %v1716 = vadd.f32 %v1700, %v1470
    %v1717 = vadd.f32 %v1701, %v1473
    %v1718 = vadd.f32 %v1702, %v1478
    %v1719 = vadd.f32 %v1703, %v1481
    %v1720 = vadd.f32 %v1704, %v1486
    %v1721 = vadd.f32 %v1705, %v1489
    %v1722 = vadd.f32 %v1706, %v1494
    %v1723 = vadd.f32 %v1707, %v1497
    %v1724 = vadd.f32 %v1708, %v1502
    %v1725 = vadd.f32 %v1709, %v1505
    %v1726 = vadd.f32 %v1710, %v1510
    %v1727 = vadd.f32 %v1711, %v1513
    %v1728 = vmax.f32 %v1712, 0.0
    %v1729 = vmax.f32 %v1713, 0.0
    %v1730 = vmax.f32 %v1714, 0.0
    %v1731 = vmax.f32 %v1715, 0.0
    %v1732 = vmax.f32 %v1716, 0.0
    %v1733 = vmax.f32 %v1717, 0.0
    %v1734 = vmax.f32 %v1718, 0.0
    %v1735 = vmax.f32 %v1719, 0.0
    %v1736 = vmax.f32 %v1720, 0.0
    %v1737 = vmax.f32 %v1721, 0.0
    %v1738 = vmax.f32 %v1722, 0.0
    %v1739 = vmax.f32 %v1723, 0.0
    %v1740 = vmax.f32 %v1724, 0.0
    %v1741 = vmax.f32 %v1725, 0.0
    %v1742 = vmax.f32 %v1726, 0.0
    %v1743 = vmax.f32 %v1727, 0.0
    %v1744 = vadd.f32 %v1728, %v785
    %v1745 = vadd.f32 %v1729, %v786
    %v1746 = vadd.f32 %v1730, %v787
    %v1747 = vadd.f32 %v1731, %v788
    %v1748 = vadd.f32 %v1732, %v789
    %v1749 = vadd.f32 %v1733, %v790
    %v1750 = vadd.f32 %v1734, %v791
    %v1751 = vadd.f32 %v1735, %v792
    %v1752 = vadd.f32 %v1736, %v793
    %v1753 = vadd.f32 %v1737, %v794
    %v1754 = vadd.f32 %v1738, %v795
    %v1755 = vadd.f32 %v1739, %v796
    %v1756 = vadd.f32 %v1740, %v797
    %v1757 = vadd.f32 %v1741, %v798
    %v1758 = vadd.f32 %v1742, %v799
    %v1759 = vadd.f32 %v1743, %v800
    %v1760 = vrot.slane %v1744, 4
    %v1761 = vadd.f32 %v1744, %v1760
    %v1762 = vrot.slane %v1761, 2
    %v1763 = vadd.f32 %v1761, %v1762
    %v1764 = vrot.slane %v1763, 1
    %v1765 = vadd.f32 %v1763, %v1764
    %v1766 = vrot.slane %v1745, 4
    %v1767 = vadd.f32 %v1745, %v1766
    %v1768 = vrot.slane %v1767, 2
    %v1769 = vadd.f32 %v1767, %v1768
    %v1770 = vrot.slane %v1769, 1
    %v1771 = vadd.f32 %v1769, %v1770
    %v1772 = vrot.slane %v1746, 4
    %v1773 = vadd.f32 %v1746, %v1772
    %v1774 = vrot.slane %v1773, 2
    %v1775 = vadd.f32 %v1773, %v1774
    %v1776 = vrot.slane %v1775, 1
    %v1777 = vadd.f32 %v1775, %v1776
    %v1778 = vrot.slane %v1747, 4
    %v1779 = vadd.f32 %v1747, %v1778
    %v1780 = vrot.slane %v1779, 2
    %v1781 = vadd.f32 %v1779, %v1780
    %v1782 = vrot.slane %v1781, 1
    %v1783 = vadd.f32 %v1781, %v1782
    %v1784 = vrot.slane %v1748, 4
    %v1785 = vadd.f32 %v1748, %v1784
    %v1786 = vrot.slane %v1785, 2
    %v1787 = vadd.f32 %v1785, %v1786
    %v1788 = vrot.slane %v1787, 1
    %v1789 = vadd.f32 %v1787, %v1788
    %v1790 = vrot.slane %v1749, 4
    %v1791 = vadd.f32 %v1749, %v1790
    %v1792 = vrot.slane %v1791, 2
    %v1793 = vadd.f32 %v1791, %v1792
    %v1794 = vrot.slane %v1793, 1
    %v1795 = vadd.f32 %v1793, %v1794
    %v1796 = vrot.slane %v1750, 4
    %v1797 = vadd.f32 %v1750, %v1796
    %v1798 = vrot.slane %v1797, 2
    %v1799 = vadd.f32 %v1797, %v1798
    %v1800 = vrot.slane %v1799, 1
    %v1801 = vadd.f32 %v1799, %v1800
    %v1802 = vrot.slane %v1751, 4
    %v1803 = vadd.f32 %v1751, %v1802
    %v1804 = vrot.slane %v1803, 2
    %v1805 = vadd.f32 %v1803, %v1804
    %v1806 = vrot.slane %v1805, 1
    %v1807 = vadd.f32 %v1805, %v1806
    %v1808 = vrot.slane %v1752, 4
    %v1809 = vadd.f32 %v1752, %v1808
    %v1810 = vrot.slane %v1809, 2
    %v1811 = vadd.f32 %v1809, %v1810
    %v1812 = vrot.slane %v1811, 1
    %v1813 = vadd.f32 %v1811, %v1812
    %v1814 = vrot.slane %v1753, 4
    %v1815 = vadd.f32 %v1753, %v1814
    %v1816 = vrot.slane %v1815, 2
    %v1817 = vadd.f32 %v1815, %v1816
    %v1818 = vrot.slane %v1817, 1
    %v1819 = vadd.f32 %v1817, %v1818
    %v1820 = vrot.slane %v1754, 4
    %v1821 = vadd.f32 %v1754, %v1820
    %v1822 = vrot.slane %v1821, 2
    %v1823 = vadd.f32 %v1821, %v1822
    %v1824 = vrot.slane %v1823, 1
    %v1825 = vadd.f32 %v1823, %v1824
    %v1826 = vrot.slane %v1755, 4
    %v1827 = vadd.f32 %v1755, %v1826
    %v1828 = vrot.slane %v1827, 2
    %v1829 = vadd.f32 %v1827, %v1828
    %v1830 = vrot.slane %v1829, 1
    %v1831 = vadd.f32 %v1829, %v1830
    %v1832 = vrot.slane %v1756, 4
    %v1833 = vadd.f32 %v1756, %v1832
    %v1834 = vrot.slane %v1833, 2
    %v1835 = vadd.f32 %v1833, %v1834
    %v1836 = vrot.slane %v1835, 1
    %v1837 = vadd.f32 %v1835, %v1836
    %v1838 = vrot.slane %v1757, 4
    %v1839 = vadd.f32 %v1757, %v1838
    %v1840 = vrot.slane %v1839, 2
    %v1841 = vadd.f32 %v1839, %v1840
    %v1842 = vrot.slane %v1841, 1
    %v1843 = vadd.f32 %v1841, %v1842
    %v1844 = vrot.slane %v1758, 4
    %v1845 = vadd.f32 %v1758, %v1844
    %v1846 = vrot.slane %v1845, 2
    %v1847 = vadd.f32 %v1845, %v1846
    %v1848 = vrot.slane %v1847, 1
    %v1849 = vadd.f32 %v1847, %v1848
    %v1850 = vrot.slane %v1759, 4
    %v1851 = vadd.f32 %v1759, %v1850
    %v1852 = vrot.slane %v1851, 2
    %v1853 = vadd.f32 %v1851, %v1852
    %v1854 = vrot.slane %v1853, 1
    %v1855 = vadd.f32 %v1853, %v1854
    %v1856 = vpack.c.bf16 %v1765, %v1765
    %v1857 = vpack.c.bf16 %v1771, %v1771
    %v1858 = vpack.c.bf16 %v1777, %v1777
    %v1859 = vpack.c.bf16 %v1783, %v1783
    %v1860 = vpack.c.bf16 %v1789, %v1789
    %v1861 = vpack.c.bf16 %v1795, %v1795
    %v1862 = vpack.c.bf16 %v1801, %v1801
    %v1863 = vpack.c.bf16 %v1807, %v1807
    %v1864 = vpack.c.bf16 %v1813, %v1813
    %v1865 = vpack.c.bf16 %v1819, %v1819
    %v1866 = vpack.c.bf16 %v1825, %v1825
    %v1867 = vpack.c.bf16 %v1831, %v1831
    %v1868 = vpack.c.bf16 %v1837, %v1837
    %v1869 = vpack.c.bf16 %v1843, %v1843
    %v1870 = vpack.c.bf16 %v1849, %v1849
    %v1871 = vpack.c.bf16 %v1855, %v1855
    %v1888 = vunpack.c.l.b16 %v1856
    %v1889 = vunpack.c.l.b16 %v1857
    %v1890 = vunpack.c.l.b16 %v1858
    %v1891 = vunpack.c.l.b16 %v1859
    %v1892 = vunpack.c.l.b16 %v1860
    %v1893 = vunpack.c.l.b16 %v1861
    %v1894 = vunpack.c.l.b16 %v1862
    %v1895 = vunpack.c.l.b16 %v1863
    %v1896 = vunpack.c.l.b16 %v1864
    %v1897 = vunpack.c.l.b16 %v1865
    %v1898 = vunpack.c.l.b16 %v1866
    %v1899 = vunpack.c.l.b16 %v1867
    %v1900 = vunpack.c.l.b16 %v1868
    %v1901 = vunpack.c.l.b16 %v1869
    %v1902 = vunpack.c.l.b16 %v1870
    %v1903 = vunpack.c.l.b16 %v1871
    %v1904 = vsel %vm945, %v1889, %v1888
    %v1905 = vsel %vm947, %v1890, %v1904
    %v1906 = vsel %vm949, %v1891, %v1905
    %v1907 = vsel %vm951, %v1892, %v1906
    %v1908 = vsel %vm953, %v1893, %v1907
    %v1909 = vsel %vm955, %v1894, %v1908
    %v1910 = vsel %vm957, %v1895, %v1909
    %v1911 = vsel %vm945, %v1897, %v1896
    %v1912 = vsel %vm947, %v1898, %v1911
    %v1913 = vsel %vm949, %v1899, %v1912
    %v1914 = vsel %vm951, %v1900, %v1913
    %v1915 = vsel %vm953, %v1901, %v1914
    %v1916 = vsel %vm955, %v1902, %v1915
    %v1917 = vsel %vm957, %v1903, %v1916
    %v1918 = vpack.c.b16 %v1917, %v1910
    %v1936 = vunpack.c.l.b16 %v1122
    %v1937 = vunpack.c.l.b16 %v1123
    %v1938 = vunpack.c.l.b16 %v1124
    %v1939 = vunpack.c.l.b16 %v1125
    %v1940 = vunpack.c.l.b16 %v1126
    %v1941 = vunpack.c.l.b16 %v1127
    %v1942 = vunpack.c.l.b16 %v1128
    %v1943 = vunpack.c.l.b16 %v1129
    %v1944 = vunpack.c.l.b16 %v1130
    %v1945 = vunpack.c.l.b16 %v1131
    %v1946 = vunpack.c.l.b16 %v1132
    %v1947 = vunpack.c.l.b16 %v1133
    %v1948 = vunpack.c.l.b16 %v1134
    %v1949 = vunpack.c.l.b16 %v1135
    %v1950 = vunpack.c.l.b16 %v1136
    %v1951 = vunpack.c.l.b16 %v1137
    %v1952 = vpack.c.b16 %v1937, %v1936
    %v1953 = vpack.c.b16 %v1939, %v1938
    %v1954 = vpack.c.b16 %v1941, %v1940
    %v1955 = vpack.c.b16 %v1943, %v1942
    %v1956 = vpack.c.b16 %v1945, %v1944
    %v1957 = vpack.c.b16 %v1947, %v1946
    %v1958 = vpack.c.b16 %v1949, %v1948
    %v1959 = vpack.c.b16 %v1951, %v1950
    %1968 = vmatprep.subr.bf16.mxu0 0
    %1969 = vmatpush1.bf16.msra.mxu0 %v1952
    %1970 = vmatprep.subr.bf16.mxu0 0
    %1971 = vmatpush1.bf16.msra.mxu0 %v1953
    %1972 = vmatprep.subr.bf16.mxu0 0
    %1973 = vmatpush1.bf16.msra.mxu0 %v1954
    %1974 = vmatprep.subr.bf16.mxu0 0
    %1975 = vmatpush1.bf16.msra.mxu0 %v1955
    %1976 = vmatprep.subr.bf16.mxu0 0
    %1977 = vmatpush1.bf16.msra.mxu0 %v1956
    %1978 = vmatprep.subr.bf16.mxu0 0
    %1979 = vmatpush1.bf16.msra.mxu0 %v1957
    %1980 = vmatprep.subr.bf16.mxu0 0
    %1981 = vmatpush1.bf16.msra.mxu0 %v1958
    %1982 = vmatprep.subr.bf16.mxu0 0
    %1983 = vmatpush1.bf16.msra.mxu0 %v1959
    %1984 = vmatprep.subr.bf16.mxu0 0
    %1985 = vmatpush1.bf16.msra.mxu0 0
    %1986 = vmatprep.subr.bf16.mxu0 0
    %1987 = vmatpush1.bf16.msra.mxu0 0
    %1988 = vmatprep.subr.bf16.mxu0 0
    %1989 = vmatpush1.bf16.msra.mxu0 0
    %1990 = vmatprep.subr.bf16.mxu0 0
    %1991 = vmatpush1.bf16.msra.mxu0 0
    %1992 = vmatprep.subr.bf16.mxu0 0
    %1993 = vmatpush1.bf16.msra.mxu0 0
    %1994 = vmatprep.subr.bf16.mxu0 0
    %1995 = vmatpush1.bf16.msra.mxu0 0
    %1996 = vmatprep.subr.bf16.mxu0 0
    %1997 = vmatpush1.bf16.msra.mxu0 0
    %1998 = vmatprep.subr.bf16.mxu0 0
    %1999 = vmatpush1.bf16.msra.mxu0 0
    %2000 = vmatprep.mubr.bf16.mxu0 0
    %2001 = vmatmul.mubr.bf16.gmra.mrb[0].mxu0 %v1918
    %v2002 = vpop.f32.mrb[0].mxu0
    %v2003 = vadd.f32 0.0, %v2002
    %v2004 = vpop.f32.mrb[0].mxu0
    %v2005 = vpop.f32.mrb[0].mxu0
    %v2006 = vadd.f32 0.0, %v2005
    %v2007 = vpop.f32.mrb[0].mxu0
    %2008 = vdwg.mxu0
    %v2009 = vadd.f32 %v1349, %v2003
    %v2010 = vadd.f32 %v1352, %v2006
    %v2012 = vlaneseq
    %v2013 = vshrl.u32 %v2012, 7
    %v2014 = vsub.s32 0, %v2013
    %v2015 = vrot.slane %v1141, %v2014
    %v2017 = vadd.f32 %v2009, %v2015
    %v2018 = vadd.f32 %v2010, %v2015
    %v2019 = vmax.f32 %v2017, 0.0
    %v2020 = vmax.f32 %v2018, 0.0
    %v2021 = vadd.f32 %v2019, %v1069
    %v2022 = vadd.f32 %v2020, %v1070
    %2023 = vst [vmem:[#allocation11] sm:$0xff] %v2021
    %2024 = vst [vmem:[#allocation11 + $0x8] sm:$0xff] %v2022
    %2025 = vst [vmem:[#allocation12] sm:$0xff] %v1744
    %2026 = vst [vmem:[#allocation12 + $0x8] sm:$0xff] %v1745
    %2027 = vst [vmem:[#allocation12 + $0x10] sm:$0xff] %v1746
    %2028 = vst [vmem:[#allocation12 + $0x18] sm:$0xff] %v1747
    %2029 = vst [vmem:[#allocation12 + $0x20] sm:$0xff] %v1748
    %2030 = vst [vmem:[#allocation12 + $0x28] sm:$0xff] %v1749
    %2031 = vst [vmem:[#allocation12 + $0x30] sm:$0xff] %v1750
    %2032 = vst [vmem:[#allocation12 + $0x38] sm:$0xff] %v1751
    %2033 = vst [vmem:[#allocation12 + $0x40] sm:$0xff] %v1752
    %2034 = vst [vmem:[#allocation12 + $0x48] sm:$0xff] %v1753
    %2035 = vst [vmem:[#allocation12 + $0x50] sm:$0xff] %v1754
    %2036 = vst [vmem:[#allocation12 + $0x58] sm:$0xff] %v1755
    %2037 = vst [vmem:[#allocation12 + $0x60] sm:$0xff] %v1756
    %2038 = vst [vmem:[#allocation12 + $0x68] sm:$0xff] %v1757
    %2039 = vst [vmem:[#allocation12 + $0x70] sm:$0xff] %v1758
    %2040 = vst [vmem:[#allocation12 + $0x78] sm:$0xff] %v1759
    // Predicated region
    $region50: #{tpu_custom_call.1} parent=1 // pred_check
      _
    $region51: #{tpu_custom_call.1} parent=1 // pred_check_branch
      %2042 = sbr.rel (0) target = $region53
    $region52: #{tpu_custom_call.1} parent=1 // pred_region
      %s2044 = ssub.s32 256, 256
      %2045 = vsyncadd [#allocation4], %s2044
      %s2046 = sshll.u32 [#allocation11], 4
      %s2047 = int_to_ptr.vmem [resolvable:$true] %s2046
      %2052 = dma.vmem_to_hbm [thread:$0]  %s2047, 256, %s7, [#allocation4], 128, 128, 8
    $region53: #{tpu_custom_call.1} parent=1 // pred_fallthru
      _
    // Predicated region
    $region54: #{tpu_custom_call.1} parent=1 // pred_check
      _
    $region55: #{tpu_custom_call.1} parent=1 // pred_check_branch
      %2054 = sbr.rel (0) target = $region57
    $region56: #{tpu_custom_call.1} parent=1 // pred_region
      %s2056 = ssub.s32 2048, 2048
      %2057 = vsyncadd [#allocation13], %s2056
      %s2058 = sshll.u32 [#allocation12], 4
      %s2059 = int_to_ptr.vmem [resolvable:$true] %s2058
      %2064 = dma.vmem_to_hbm [thread:$0]  %s2059, 2048, %s8, [#allocation13], 128, 128, 8
    $region57: #{tpu_custom_call.1} parent=1 // pred_fallthru
      _
    // Predicated region
    $region58: #{tpu_custom_call.1} parent=1 // pred_check
      _
    $region59: #{tpu_custom_call.1} parent=1 // pred_check_branch
      %2066 = sbr.rel (0) target = $region61
    $region60: #{tpu_custom_call.1} parent=1 // pred_region
      %2067 = dma.done [#allocation4], 256
    $region61: #{tpu_custom_call.1} parent=1 // pred_fallthru
      _
    // Predicated region
    $region62: #{tpu_custom_call.1} parent=1 // pred_check
      _
    $region63: #{tpu_custom_call.1} parent=1 // pred_check_branch
      %2069 = sbr.rel (0) target = $region65
    $region64: #{tpu_custom_call.1} parent=1 // pred_region
      %2070 = dma.done [#allocation13], 2048
    $region65: #{tpu_custom_call.1} parent=1 // pred_fallthru
      _
    %2071 = vsyncpa [#allocation3], 1
    %2072 = vsyncpa [#allocation6], 1
    %2073 = vsyncpa [#allocation9], 1
    %2074 = vsyncpa [#allocation4], 1
    %2075 = vsyncpa [#allocation13], 1

</llo_original>
